<compile_context>
chip_gen: v7x
topology: tpu7x:2x2x1
jax: 0.10.0
libtpu: 0.0.40
codegen_flags: <defaults>
</compile_context>

<pallas_src>
import functools

import jax
import jax.numpy as jnp
from jax.experimental import pallas as pl
from jax.experimental.pallas import tpu as pltpu


# ----------------------------- Pallas kernel -------------------------------
def _stack_encoder_kernel(x_ref, m1_ref, s1_ref, b1_ref,
                          m2_ref, s2_ref, b2_ref, sel_ref,
                          copy_ref, pool_ref, *, channels_out):
    """One grid step processes `nb` images (rows flattened into the matmul M).

    x_ref    : (nb, H, W*C1)            f32   NHWC rows, lanes = (x*C1 + c)
    m1_ref   : (3*W*C1, W*C2)           bf16  merged banded conv1 weights
    s1, b1   : (1, W*C2)                f32   folded BN1 scale / bias
    m2_ref   : (3*W*C2, W*C2)           bf16  merged banded conv2 weights
    s2, b2   : (1, W*C2)                f32   folded BN2 scale / bias
    sel_ref  : (W*C2, (W/2)*C2)         bf16  0/1 pool column-compaction matrix
    copy_ref : (nb, H, W*C2)            bf16  copy_out rows
    pool_ref : (nb, H/2, (W/2)*C2)      bf16  2x2 max-pooled rows
    """
    nb, H, wc1 = x_ref.shape
    R = nb * H
    wc2 = copy_ref.shape[-1]
    C2 = channels_out

    def conv3x3(v, m_ref):
        # v: (R, K) f32 lane-dense rows.  Vertical halo via XLU sublane rolls
        # + per-image zero boundary mask (VPU); horizontal taps and width
        # zero-padding are folded into the banded matrix.  All three vertical
        # taps are merged into a single K = 3*K contraction on the MXU.
        Rv, K = v.shape
        row = jax.lax.broadcasted_iota(jnp.int32, (Rv, K), 0)
        v_dn = jnp.where(row % H == 0, 0.0, pltpu.roll(v, 1, axis=0))        # v[y-1]
        v_up = jnp.where(row % H == H - 1, 0.0, pltpu.roll(v, Rv - 1, axis=0))  # v[y+1]
        v_cat = jnp.concatenate([v_dn, v, v_up], axis=-1).astype(jnp.bfloat16)
        return jnp.dot(v_cat, m_ref[...], preferred_element_type=jnp.float32)

    x = x_ref[...].reshape(R, wc1)

    # Conv1 + folded BN1 + ReLU (f32 epilogue on full-lane rows).
    y1 = jnp.maximum(conv3x3(x, m1_ref) * s1_ref[0] + b1_ref[0], 0.0)
    # Conv2 + folded BN2 + ReLU.
    y2 = jnp.maximum(conv3x3(y1, m2_ref) * s2_ref[0] + b2_ref[0], 0.0)

    # bf16 copy_out store (lane-dense, halves writeback).
    copy_ref[...] = y2.reshape(nb, H, wc2).astype(copy_ref.dtype)

    # 2x2 max-pool fully in-kernel:
    #   row-pair max    -> sublane-only reshape + max (H even, pairs never
    #                      straddle images)
    #   column-pair max -> lane roll by C2 (XLU) + max (VPU)
    #   lane compaction -> exact 0/1 bf16 selection matmul to (W/2)*C2 lanes.
    rmax = jnp.max(y2.reshape(R // 2, 2, wc2), axis=1)             # (R/2, W*C2)
    cmax = jnp.maximum(rmax, pltpu.roll(rmax, wc2 - C2, axis=1))   # pair max at even cols
    pooled = jnp.dot(cmax.astype(jnp.bfloat16), sel_ref[...],
                     preferred_element_type=jnp.float32)           # (R/2, (W/2)*C2)
    pool_ref[...] = pooled.reshape(nb, H // 2,
                                   pool_ref.shape[-1]).astype(pool_ref.dtype)


# ------------------------- wrapper-side preprocessing -----------------------
def _banded_weights_merged(w_hwio, width):
    """Fold the 3 horizontal taps + width zero-padding of a 3x3 'same' conv
    into a single (3*width*cin, width*cout) matrix so that
        out_row[y] = [in_row[y-1] | in_row[y] | in_row[y+1]] @ M
    with rows flattened lane-dense as (x*C + c)."""
    kh, kw, cin, cout = w_hwio.shape
    xi = jnp.arange(width)[:, None]             # input column
    xo = jnp.arange(width)[None, :]             # output column
    kx = xi - xo + (kw // 2)                    # horizontal tap feeding xi -> xo
    valid = (kx >= 0) & (kx < kw)
    kxc = jnp.clip(kx, 0, kw - 1)
    mats = []
    for ky in range(kh):
        blk = w_hwio[ky][kxc]                                   # (W, W, cin, cout)
        blk = jnp.where(valid[:, :, None, None], blk, 0.0)
        mats.append(jnp.transpose(blk, (0, 2, 1, 3))
                    .reshape(width * cin, width * cout))
    return jnp.concatenate(mats, axis=0)        # (3*W*cin, W*cout)


def _pool_select(width, cout):
    """0/1 matrix: lane (xin*cout + c) -> lane (xout*cout + c) iff xin == 2*xout.
    Used to compact the column-pair maxima (valid at even-column lane blocks)
    down to (width/2)*cout lanes via an exact bf16 matmul."""
    li = jnp.arange(width * cout)
    lo = jnp.arange((width // 2) * cout)
    sel = ((li[:, None] // cout == 2 * (lo[None, :] // cout)) &
           (li[:, None] % cout == lo[None, :] % cout))
    return sel.astype(jnp.bfloat16)


def _fold_bn(bn, width, eps):
    gamma, beta, mean, var = bn
    scale = (gamma / jnp.sqrt(var + eps)).astype(jnp.float32)
    bias = (beta - mean * scale).astype(jnp.float32)
    # Tile over the W positions of the flattened (x*C + c) lane axis.
    return jnp.tile(scale, width)[None, :], jnp.tile(bias, width)[None, :]


def _choose_batch_block(n, h, target_rows=128):
    """Largest divisor nb of n with nb*h <= target_rows, preferring grid >= 2
    (dual-TensorCore occupancy on v7x)."""
    divisors = [d for d in range(1, n + 1) if n % d == 0 and d * h <= target_rows]
    if not divisors:
        return 1
    multi = [d for d in divisors if n // d >= 2]
    return max(multi) if multi else max(divisors)


def stack_encoder_pallas(x_nchw, w1_oihw, bn1, w2_oihw, bn2, *, eps=1e-5,
                         batch_block=None):
    """x_nchw: (N, C1, H, W) f32.  Returns (copy_out, poolout) in NCHW bf16."""
    N, C1, H, W = x_nchw.shape
    C2 = w1_oihw.shape[0]
    assert H % 2 == 0 and W % 2 == 0
    assert w1_oihw.shape[2:] == (3, 3) and w2_oihw.shape[2:] == (3, 3)

    nb = batch_block if batch_block is not None else _choose_batch_block(N, H)
    assert N % nb == 0

    # NCHW -> NHWC -> lane-dense rows of W*C1 (f32: sublane rolls stay cheap,
    # the kernel casts to bf16 right before the MXU).
    x_rows = (jnp.transpose(x_nchw, (0, 2, 3, 1))
              .reshape(N, H, W * C1).astype(jnp.float32))

    # OIHW -> HWIO -> merged banded (3*W*Cin, W*Cout) matrices, bf16.
    w1 = jnp.transpose(w1_oihw, (2, 3, 1, 0)).astype(jnp.float32)
    w2 = jnp.transpose(w2_oihw, (2, 3, 1, 0)).astype(jnp.float32)
    m1 = _banded_weights_merged(w1, W).astype(jnp.bfloat16)     # (3*W*C1, W*C2)
    m2 = _banded_weights_merged(w2, W).astype(jnp.bfloat16)     # (3*W*C2, W*C2)
    sel = _pool_select(W, C2)                                   # (W*C2, (W/2)*C2)

    s1, b1 = _fold_bn(bn1, W, eps)                              # (1, W*C2)
    s2, b2 = _fold_bn(bn2, W, eps)

    kernel = functools.partial(_stack_encoder_kernel, channels_out=C2)

    copy_rows, pool_rows = pl.pallas_call(
        kernel,
        out_shape=(
            jax.ShapeDtypeStruct((N, H, W * C2), jnp.bfloat16),
            jax.ShapeDtypeStruct((N, H // 2, (W // 2) * C2), jnp.bfloat16),
        ),
        grid_spec=pltpu.PrefetchScalarGridSpec(
            num_scalar_prefetch=0,
            grid=(N // nb,),
            in_specs=[
                pl.BlockSpec((nb, H, W * C1), lambda n: (n, 0, 0)),
                pl.BlockSpec((3 * W * C1, W * C2), lambda n: (0, 0)),
                pl.BlockSpec((1, W * C2), lambda n: (0, 0)),
                pl.BlockSpec((1, W * C2), lambda n: (0, 0)),
                pl.BlockSpec((3 * W * C2, W * C2), lambda n: (0, 0)),
                pl.BlockSpec((1, W * C2), lambda n: (0, 0)),
                pl.BlockSpec((1, W * C2), lambda n: (0, 0)),
                pl.BlockSpec((W * C2, (W // 2) * C2), lambda n: (0, 0)),
            ],
            out_specs=[
                pl.BlockSpec((nb, H, W * C2), lambda n: (n, 0, 0)),
                pl.BlockSpec((nb, H // 2, (W // 2) * C2), lambda n: (n, 0, 0)),
            ],
        ),
        compiler_params=pltpu.CompilerParams(
            dimension_semantics=("parallel",),
            vmem_limit_bytes=32 * 1024 * 1024,
        ),
    )(x_rows, m1, s1, b1, m2, s2, b2, sel)

    # Back to the PyTorch NCHW interface (bf16 outputs; see module TODO about
    # keeping NHWC end-to-end in a full network).
    copy_out = jnp.transpose(copy_rows.reshape(N, H, W, C2), (0, 3, 1, 2))
    pool_out = jnp.transpose(pool_rows.reshape(N, H // 2, W // 2, C2), (0, 3, 1, 2))
    return copy_out, pool_out


# ------------------------------ pure-JAX reference --------------------------
def _reference(x_nchw, w1_oihw, bn1, w2_oihw, bn2, eps=1e-5, mxu_dtype=None):
    """f32 reference.  With mxu_dtype=bf16 it mirrors the kernel's rounding of
    conv inputs / weights (f32 accumulation in both)."""
    def conv_bn_relu(x, w, bn):
        if mxu_dtype is not None:
            x = x.astype(mxu_dtype).astype(jnp.float32)
            w = w.astype(mxu_dtype).astype(jnp.float32)
        y = jax.lax.conv_general_dilated(
            x, w, window_strides=(1, 1), padding=((1, 1), (1, 1)),
            dimension_numbers=("NCHW", "OIHW", "NCHW"),
            precision=jax.lax.Precision.HIGHEST)
        gamma, beta, mean, var = bn
        scale = (gamma / jnp.sqrt(var + eps)).reshape(1, -1, 1, 1)
        bias = (beta - mean * gamma / jnp.sqrt(var + eps)).reshape(1, -1, 1, 1)
        return jnp.maximum(y * scale + bias, 0.0)

    copy_out = conv_bn_relu(conv_bn_relu(x_nchw, w1_oihw, bn1), w2_oihw, bn2)
    n, c, h, w = copy_out.shape
    pool = jnp.max(copy_out.reshape(n, c, h // 2, 2, w // 2, 2), axis=(3, 5))
    return copy_out, pool


if __name__ == "__main__":
    key = jax.random.PRNGKey(0)
    N, C1, C2, H, W = 4, 4, 8, 16, 16

    k = jax.random.split(key, 10)
    x = jax.random.normal(k[0], (N, C1, H, W), jnp.float32)

    # Conv weights in PyTorch OIHW layout, BN params (gamma, beta, mean, var).
    w1 = jax.random.normal(k[1], (C2, C1, 3, 3), jnp.float32) * 0.1
    w2 = jax.random.normal(k[2], (C2, C2, 3, 3), jnp.float32) * 0.1
    bn1 = (jax.random.uniform(k[3], (C2,), minval=0.5, maxval=1.5),
           jax.random.normal(k[4], (C2,)) * 0.1,
           jax.random.normal(k[5], (C2,)) * 0.1,
           jax.random.uniform(k[6], (C2,), minval=0.5, maxval=1.5))
    bn2 = (jax.random.uniform(k[7], (C2,), minval=0.5, maxval=1.5),
           jax.random.normal(k[8], (C2,)) * 0.1,
           jax.random.normal(k[9], (C2,)) * 0.1,
           jax.random.uniform(k[3], (C2,), minval=0.5, maxval=1.5))

    copy_out, pool_out = stack_encoder_pallas(x, w1, bn1, w2, bn2)
    jax.block_until_ready((copy_out, pool_out))

    assert copy_out.shape == (N, C2, H, W)
    assert pool_out.shape == (N, C2, H // 2, W // 2)

    copy_f32 = copy_out.astype(jnp.float32)
    pool_f32 = pool_out.astype(jnp.float32)

    # Tight correctness check vs. a reference using the same bf16-rounded
    # conv inputs/weights the kernel feeds to the MXU (kernel outputs are
    # additionally bf16-rounded, hence the small extra tolerance).
    ref_copy_b, ref_pool_b = _reference(x, w1, bn1, w2, bn2,
                                        mxu_dtype=jnp.bfloat16)
    assert jnp.allclose(copy_f32, ref_copy_b, atol=3e-2, rtol=3e-2)
    assert jnp.allclose(pool_f32, ref_pool_b, atol=3e-2, rtol=3e-2)

    # Sanity check vs. the pure-f32 module (bf16 MXU operands / outputs are an
    # intentional precision/perf trade-off, so this check is loose).
    ref_copy, ref_pool = _reference(x, w1, bn1, w2, bn2)
    assert jnp.allclose(copy_f32, ref_copy, atol=1.5e-1, rtol=1.5e-1)
    assert jnp.allclose(pool_f32, ref_pool, atol=1.5e-1, rtol=1.5e-1)

    print("KERNEL_OK")
</pallas_src>

<mosaic_0001>
module attributes {stable_mosaic.version = 11 : i64} {
  func.func @_stack_encoder_kernel(%arg0: i32, %arg1: memref<2x16x64xf32, #tpu.memory_space<vmem>>, %arg2: memref<192x128xbf16, #tpu.memory_space<vmem>>, %arg3: memref<1x128xf32, #tpu.memory_space<vmem>>, %arg4: memref<1x128xf32, #tpu.memory_space<vmem>>, %arg5: memref<384x128xbf16, #tpu.memory_space<vmem>>, %arg6: memref<1x128xf32, #tpu.memory_space<vmem>>, %arg7: memref<1x128xf32, #tpu.memory_space<vmem>>, %arg8: memref<128x64xbf16, #tpu.memory_space<vmem>>, %arg9: memref<2x16x128xbf16, #tpu.memory_space<vmem>>, %arg10: memref<2x8x64xbf16, #tpu.memory_space<vmem>>) attributes {dimension_semantics = [#tpu.dimension_semantics<parallel>], iteration_bounds = array<i64: 2>, scalar_prefetch = 0 : i64, scratch_operands = 0 : i64, tpu.core_type = #tpu.core_type<tc>, window_params = [{transform_indices = @transform_0, window_bounds = array<i64: 2, 16, 64>}, {pipeline_mode = #tpu.pipeline_mode<synchronous>, transform_indices = @transform_1, window_bounds = array<i64: 192, 128>}, {pipeline_mode = #tpu.pipeline_mode<synchronous>, transform_indices = @transform_2, window_bounds = array<i64: 1, 128>}, {pipeline_mode = #tpu.pipeline_mode<synchronous>, transform_indices = @transform_3, window_bounds = array<i64: 1, 128>}, {pipeline_mode = #tpu.pipeline_mode<synchronous>, transform_indices = @transform_4, window_bounds = array<i64: 384, 128>}, {pipeline_mode = #tpu.pipeline_mode<synchronous>, transform_indices = @transform_5, window_bounds = array<i64: 1, 128>}, {pipeline_mode = #tpu.pipeline_mode<synchronous>, transform_indices = @transform_6, window_bounds = array<i64: 1, 128>}, {pipeline_mode = #tpu.pipeline_mode<synchronous>, transform_indices = @transform_7, window_bounds = array<i64: 128, 64>}, {transform_indices = @transform_8, window_bounds = array<i64: 2, 16, 128>}, {transform_indices = @transform_9, window_bounds = array<i64: 2, 8, 64>}]} {
    %c0 = arith.constant 0 : index
    %c0_0 = arith.constant 0 : index
    %c0_1 = arith.constant 0 : index
    %0 = vector.load %arg1[%c0, %c0_0, %c0_1] : memref<2x16x64xf32, #tpu.memory_space<vmem>>, vector<2x16x64xf32>
    %1 = vector.shape_cast %0 : vector<2x16x64xf32> to vector<32x64xf32>
    %2 = tpu.iota {dimensions = array<i32: 0>} : vector<32x64xi32>
    %c16_i32 = arith.constant 16 : i32
    %c0_i32 = arith.constant 0 : i32
    %3 = arith.cmpi eq, %c16_i32, %c0_i32 : i32
    %c1_i32 = arith.constant 1 : i32
    %4 = arith.select %3, %c1_i32, %c16_i32 : i32
    %5 = vector.broadcast %4 : i32 to vector<32x64xi32>
    %6 = arith.remsi %2, %5 : vector<32x64xi32>
    %c0_i32_2 = arith.constant 0 : i32
    %7 = vector.broadcast %c0_i32_2 : i32 to vector<32x64xi32>
    %8 = arith.cmpi ne, %6, %7 : vector<32x64xi32>
    %c0_i32_3 = arith.constant 0 : i32
    %9 = vector.broadcast %c0_i32_3 : i32 to vector<32x64xi32>
    %10 = arith.cmpi slt, %6, %9 : vector<32x64xi32>
    %c0_i32_4 = arith.constant 0 : i32
    %11 = arith.cmpi slt, %4, %c0_i32_4 : i32
    %12 = vector.broadcast %11 : i1 to vector<32x64xi1>
    %13 = vector.broadcast %12 : vector<32x64xi1> to vector<32x64xi1>
    %14 = arith.xori %10, %13 : vector<32x64xi1>
    %15 = arith.andi %14, %8 : vector<32x64xi1>
    %16 = vector.broadcast %4 : i32 to vector<32x64xi32>
    %17 = arith.addi %6, %16 : vector<32x64xi32>
    %18 = arith.select %15, %17, %6 : vector<32x64xi1>, vector<32x64xi32>
    %c0_i32_5 = arith.constant 0 : i32
    %19 = vector.broadcast %c0_i32_5 : i32 to vector<32x64xi32>
    %20 = arith.cmpi eq, %18, %19 : vector<32x64xi32>
    %c1_i32_6 = arith.constant 1 : i32
    %21 = tpu.dynamic_rotate %1 by %c1_i32_6 dim 0 : vector<32x64xf32>, i32 -> vector<32x64xf32>
    %cst = arith.constant 0.000000e+00 : f32
    %22 = vector.broadcast %cst : f32 to vector<32x64xf32>
    %23 = arith.select %20, %22, %21 : vector<32x64xi1>, vector<32x64xf32>
    %c16_i32_7 = arith.constant 16 : i32
    %c0_i32_8 = arith.constant 0 : i32
    %24 = arith.cmpi eq, %c16_i32_7, %c0_i32_8 : i32
    %c1_i32_9 = arith.constant 1 : i32
    %25 = arith.select %24, %c1_i32_9, %c16_i32_7 : i32
    %26 = vector.broadcast %25 : i32 to vector<32x64xi32>
    %27 = arith.remsi %2, %26 : vector<32x64xi32>
    %c0_i32_10 = arith.constant 0 : i32
    %28 = vector.broadcast %c0_i32_10 : i32 to vector<32x64xi32>
    %29 = arith.cmpi ne, %27, %28 : vector<32x64xi32>
    %c0_i32_11 = arith.constant 0 : i32
    %30 = vector.broadcast %c0_i32_11 : i32 to vector<32x64xi32>
    %31 = arith.cmpi slt, %27, %30 : vector<32x64xi32>
    %c0_i32_12 = arith.constant 0 : i32
    %32 = arith.cmpi slt, %25, %c0_i32_12 : i32
    %33 = vector.broadcast %32 : i1 to vector<32x64xi1>
    %34 = vector.broadcast %33 : vector<32x64xi1> to vector<32x64xi1>
    %35 = arith.xori %31, %34 : vector<32x64xi1>
    %36 = arith.andi %35, %29 : vector<32x64xi1>
    %37 = vector.broadcast %25 : i32 to vector<32x64xi32>
    %38 = arith.addi %27, %37 : vector<32x64xi32>
    %39 = arith.select %36, %38, %27 : vector<32x64xi1>, vector<32x64xi32>
    %c15_i32 = arith.constant 15 : i32
    %40 = vector.broadcast %c15_i32 : i32 to vector<32x64xi32>
    %41 = arith.cmpi eq, %39, %40 : vector<32x64xi32>
    %c31_i32 = arith.constant 31 : i32
    %42 = tpu.dynamic_rotate %1 by %c31_i32 dim 0 : vector<32x64xf32>, i32 -> vector<32x64xf32>
    %cst_13 = arith.constant 0.000000e+00 : f32
    %43 = vector.broadcast %cst_13 : f32 to vector<32x64xf32>
    %44 = arith.select %41, %43, %42 : vector<32x64xi1>, vector<32x64xf32>
    %45 = tpu.concatenate %23, %1, %44 in 1 : vector<32x64xf32>, vector<32x64xf32>, vector<32x64xf32> -> vector<32x192xf32>
    %46 = arith.truncf %45 : vector<32x192xf32> to vector<32x192xbf16>
    %c0_14 = arith.constant 0 : index
    %c0_15 = arith.constant 0 : index
    %47 = vector.load %arg2[%c0_14, %c0_15] : memref<192x128xbf16, #tpu.memory_space<vmem>>, vector<192x128xbf16>
    %cst_16 = arith.constant dense<0.000000e+00> : vector<32x128xf32>
    %48 = tpu.matmul %46, %47, %cst_16 {dimension_numbers = #tpu.dot_dimension_numbers<[1], [0], [0], [1], [0, 0, 1, 1], [], []>} : vector<32x192xbf16>, vector<192x128xbf16>, vector<32x128xf32> -> vector<32x128xf32>
    %c0_17 = arith.constant 0 : index
    %c0_18 = arith.constant 0 : index
    %49 = vector.load %arg3[%c0_17, %c0_18] : memref<1x128xf32, #tpu.memory_space<vmem>>, vector<1x128xf32>
    %50 = vector.shape_cast %49 : vector<1x128xf32> to vector<128xf32>
    %51 = vector.shape_cast %50 : vector<128xf32> to vector<1x128xf32>
    %52 = vector.broadcast %51 : vector<1x128xf32> to vector<32x128xf32>
    %53 = arith.mulf %48, %52 : vector<32x128xf32>
    %c0_19 = arith.constant 0 : index
    %c0_20 = arith.constant 0 : index
    %54 = vector.load %arg4[%c0_19, %c0_20] : memref<1x128xf32, #tpu.memory_space<vmem>>, vector<1x128xf32>
    %55 = vector.shape_cast %54 : vector<1x128xf32> to vector<128xf32>
    %56 = vector.shape_cast %55 : vector<128xf32> to vector<1x128xf32>
    %57 = vector.broadcast %56 : vector<1x128xf32> to vector<32x128xf32>
    %58 = arith.addf %53, %57 : vector<32x128xf32>
    %cst_21 = arith.constant 0.000000e+00 : f32
    %59 = vector.broadcast %cst_21 : f32 to vector<32x128xf32>
    %60 = arith.maximumf %58, %59 : vector<32x128xf32>
    %61 = tpu.iota {dimensions = array<i32: 0>} : vector<32x128xi32>
    %c16_i32_22 = arith.constant 16 : i32
    %c0_i32_23 = arith.constant 0 : i32
    %62 = arith.cmpi eq, %c16_i32_22, %c0_i32_23 : i32
    %c1_i32_24 = arith.constant 1 : i32
    %63 = arith.select %62, %c1_i32_24, %c16_i32_22 : i32
    %64 = vector.broadcast %63 : i32 to vector<32x128xi32>
    %65 = arith.remsi %61, %64 : vector<32x128xi32>
    %c0_i32_25 = arith.constant 0 : i32
    %66 = vector.broadcast %c0_i32_25 : i32 to vector<32x128xi32>
    %67 = arith.cmpi ne, %65, %66 : vector<32x128xi32>
    %c0_i32_26 = arith.constant 0 : i32
    %68 = vector.broadcast %c0_i32_26 : i32 to vector<32x128xi32>
    %69 = arith.cmpi slt, %65, %68 : vector<32x128xi32>
    %c0_i32_27 = arith.constant 0 : i32
    %70 = arith.cmpi slt, %63, %c0_i32_27 : i32
    %71 = vector.broadcast %70 : i1 to vector<32x128xi1>
    %72 = vector.broadcast %71 : vector<32x128xi1> to vector<32x128xi1>
    %73 = arith.xori %69, %72 : vector<32x128xi1>
    %74 = arith.andi %73, %67 : vector<32x128xi1>
    %75 = vector.broadcast %63 : i32 to vector<32x128xi32>
    %76 = arith.addi %65, %75 : vector<32x128xi32>
    %77 = arith.select %74, %76, %65 : vector<32x128xi1>, vector<32x128xi32>
    %c0_i32_28 = arith.constant 0 : i32
    %78 = vector.broadcast %c0_i32_28 : i32 to vector<32x128xi32>
    %79 = arith.cmpi eq, %77, %78 : vector<32x128xi32>
    %c1_i32_29 = arith.constant 1 : i32
    %80 = tpu.dynamic_rotate %60 by %c1_i32_29 dim 0 : vector<32x128xf32>, i32 -> vector<32x128xf32>
    %cst_30 = arith.constant 0.000000e+00 : f32
    %81 = vector.broadcast %cst_30 : f32 to vector<32x128xf32>
    %82 = arith.select %79, %81, %80 : vector<32x128xi1>, vector<32x128xf32>
    %c16_i32_31 = arith.constant 16 : i32
    %c0_i32_32 = arith.constant 0 : i32
    %83 = arith.cmpi eq, %c16_i32_31, %c0_i32_32 : i32
    %c1_i32_33 = arith.constant 1 : i32
    %84 = arith.select %83, %c1_i32_33, %c16_i32_31 : i32
    %85 = vector.broadcast %84 : i32 to vector<32x128xi32>
    %86 = arith.remsi %61, %85 : vector<32x128xi32>
    %c0_i32_34 = arith.constant 0 : i32
    %87 = vector.broadcast %c0_i32_34 : i32 to vector<32x128xi32>
    %88 = arith.cmpi ne, %86, %87 : vector<32x128xi32>
    %c0_i32_35 = arith.constant 0 : i32
    %89 = vector.broadcast %c0_i32_35 : i32 to vector<32x128xi32>
    %90 = arith.cmpi slt, %86, %89 : vector<32x128xi32>
    %c0_i32_36 = arith.constant 0 : i32
    %91 = arith.cmpi slt, %84, %c0_i32_36 : i32
    %92 = vector.broadcast %91 : i1 to vector<32x128xi1>
    %93 = vector.broadcast %92 : vector<32x128xi1> to vector<32x128xi1>
    %94 = arith.xori %90, %93 : vector<32x128xi1>
    %95 = arith.andi %94, %88 : vector<32x128xi1>
    %96 = vector.broadcast %84 : i32 to vector<32x128xi32>
    %97 = arith.addi %86, %96 : vector<32x128xi32>
    %98 = arith.select %95, %97, %86 : vector<32x128xi1>, vector<32x128xi32>
    %c15_i32_37 = arith.constant 15 : i32
    %99 = vector.broadcast %c15_i32_37 : i32 to vector<32x128xi32>
    %100 = arith.cmpi eq, %98, %99 : vector<32x128xi32>
    %c31_i32_38 = arith.constant 31 : i32
    %101 = tpu.dynamic_rotate %60 by %c31_i32_38 dim 0 : vector<32x128xf32>, i32 -> vector<32x128xf32>
    %cst_39 = arith.constant 0.000000e+00 : f32
    %102 = vector.broadcast %cst_39 : f32 to vector<32x128xf32>
    %103 = arith.select %100, %102, %101 : vector<32x128xi1>, vector<32x128xf32>
    %104 = tpu.concatenate %82, %60, %103 in 1 : vector<32x128xf32>, vector<32x128xf32>, vector<32x128xf32> -> vector<32x384xf32>
    %105 = arith.truncf %104 : vector<32x384xf32> to vector<32x384xbf16>
    %c0_40 = arith.constant 0 : index
    %c0_41 = arith.constant 0 : index
    %106 = vector.load %arg5[%c0_40, %c0_41] : memref<384x128xbf16, #tpu.memory_space<vmem>>, vector<384x128xbf16>
    %cst_42 = arith.constant dense<0.000000e+00> : vector<32x128xf32>
    %107 = tpu.matmul %105, %106, %cst_42 {dimension_numbers = #tpu.dot_dimension_numbers<[1], [0], [0], [1], [0, 0, 1, 1], [], []>} : vector<32x384xbf16>, vector<384x128xbf16>, vector<32x128xf32> -> vector<32x128xf32>
    %c0_43 = arith.constant 0 : index
    %c0_44 = arith.constant 0 : index
    %108 = vector.load %arg6[%c0_43, %c0_44] : memref<1x128xf32, #tpu.memory_space<vmem>>, vector<1x128xf32>
    %109 = vector.shape_cast %108 : vector<1x128xf32> to vector<128xf32>
    %110 = vector.shape_cast %109 : vector<128xf32> to vector<1x128xf32>
    %111 = vector.broadcast %110 : vector<1x128xf32> to vector<32x128xf32>
    %112 = arith.mulf %107, %111 : vector<32x128xf32>
    %c0_45 = arith.constant 0 : index
    %c0_46 = arith.constant 0 : index
    %113 = vector.load %arg7[%c0_45, %c0_46] : memref<1x128xf32, #tpu.memory_space<vmem>>, vector<1x128xf32>
    %114 = vector.shape_cast %113 : vector<1x128xf32> to vector<128xf32>
    %115 = vector.shape_cast %114 : vector<128xf32> to vector<1x128xf32>
    %116 = vector.broadcast %115 : vector<1x128xf32> to vector<32x128xf32>
    %117 = arith.addf %112, %116 : vector<32x128xf32>
    %cst_47 = arith.constant 0.000000e+00 : f32
    %118 = vector.broadcast %cst_47 : f32 to vector<32x128xf32>
    %119 = arith.maximumf %117, %118 : vector<32x128xf32>
    %120 = vector.shape_cast %119 : vector<32x128xf32> to vector<2x16x128xf32>
    %121 = arith.truncf %120 : vector<2x16x128xf32> to vector<2x16x128xbf16>
    %c0_48 = arith.constant 0 : index
    %c0_49 = arith.constant 0 : index
    %c0_50 = arith.constant 0 : index
    %122 = vector.load %arg9[%c0_48, %c0_49, %c0_50] : memref<2x16x128xbf16, #tpu.memory_space<vmem>>, vector<2x16x128xbf16>
    tpu.vector_store %arg9[%c0_48, %c0_49, %c0_50], %121 {strides = array<i32>} : memref<2x16x128xbf16, #tpu.memory_space<vmem>>, vector<2x16x128xbf16>,
    %123 = vector.shape_cast %119 : vector<32x128xf32> to vector<16x2x128xf32>
    %cst_51 = arith.constant dense<0xFF800000> : vector<16x128xf32>
    %124 = vector.multi_reduction <maximumf>, %123, %cst_51 [1] : vector<16x2x128xf32> to vector<16x128xf32>
    %c120_i32 = arith.constant 120 : i32
    %125 = tpu.dynamic_rotate %124 by %c120_i32 dim 1 : vector<16x128xf32>, i32 -> vector<16x128xf32>
    %126 = arith.maximumf %124, %125 : vector<16x128xf32>
    %127 = arith.truncf %126 : vector<16x128xf32> to vector<16x128xbf16>
    %c0_52 = arith.constant 0 : index
    %c0_53 = arith.constant 0 : index
    %128 = vector.load %arg8[%c0_52, %c0_53] : memref<128x64xbf16, #tpu.memory_space<vmem>>, vector<128x64xbf16>
    %cst_54 = arith.constant dense<0.000000e+00> : vector<16x64xf32>
    %129 = tpu.matmul %127, %128, %cst_54 {dimension_numbers = #tpu.dot_dimension_numbers<[1], [0], [0], [1], [0, 0, 1, 1], [], []>} : vector<16x128xbf16>, vector<128x64xbf16>, vector<16x64xf32> -> vector<16x64xf32>
    %130 = vector.shape_cast %129 : vector<16x64xf32> to vector<2x8x64xf32>
    %131 = arith.truncf %130 : vector<2x8x64xf32> to vector<2x8x64xbf16>
    %c0_55 = arith.constant 0 : index
    %c0_56 = arith.constant 0 : index
    %c0_57 = arith.constant 0 : index
    %132 = vector.load %arg10[%c0_55, %c0_56, %c0_57] : memref<2x8x64xbf16, #tpu.memory_space<vmem>>, vector<2x8x64xbf16>
    tpu.vector_store %arg10[%c0_55, %c0_56, %c0_57], %131 {strides = array<i32>} : memref<2x8x64xbf16, #tpu.memory_space<vmem>>, vector<2x8x64xbf16>,
    return
  }
  func.func @transform_0(%arg0: i32) -> (i32, i32, i32) {
    %c0_i32 = arith.constant 0 : i32
    %c0_i32_0 = arith.constant 0 : i32
    %c0_i32_1 = arith.constant 0 : i32
    return %arg0, %c0_i32, %c0_i32_0 : i32, i32, i32
  }
  func.func @transform_1(%arg0: i32) -> (i32, i32) {
    %c0_i32 = arith.constant 0 : i32
    %c0_i32_0 = arith.constant 0 : i32
    %c0_i32_1 = arith.constant 0 : i32
    return %c0_i32, %c0_i32_0 : i32, i32
  }
  func.func @transform_2(%arg0: i32) -> (i32, i32) {
    %c0_i32 = arith.constant 0 : i32
    %c0_i32_0 = arith.constant 0 : i32
    %c0_i32_1 = arith.constant 0 : i32
    return %c0_i32, %c0_i32_0 : i32, i32
  }
  func.func @transform_3(%arg0: i32) -> (i32, i32) {
    %c0_i32 = arith.constant 0 : i32
    %c0_i32_0 = arith.constant 0 : i32
    %c0_i32_1 = arith.constant 0 : i32
    return %c0_i32, %c0_i32_0 : i32, i32
  }
  func.func @transform_4(%arg0: i32) -> (i32, i32) {
    %c0_i32 = arith.constant 0 : i32
    %c0_i32_0 = arith.constant 0 : i32
    %c0_i32_1 = arith.constant 0 : i32
    return %c0_i32, %c0_i32_0 : i32, i32
  }
  func.func @transform_5(%arg0: i32) -> (i32, i32) {
    %c0_i32 = arith.constant 0 : i32
    %c0_i32_0 = arith.constant 0 : i32
    %c0_i32_1 = arith.constant 0 : i32
    return %c0_i32, %c0_i32_0 : i32, i32
  }
  func.func @transform_6(%arg0: i32) -> (i32, i32) {
    %c0_i32 = arith.constant 0 : i32
    %c0_i32_0 = arith.constant 0 : i32
    %c0_i32_1 = arith.constant 0 : i32
    return %c0_i32, %c0_i32_0 : i32, i32
  }
  func.func @transform_7(%arg0: i32) -> (i32, i32) {
    %c0_i32 = arith.constant 0 : i32
    %c0_i32_0 = arith.constant 0 : i32
    %c0_i32_1 = arith.constant 0 : i32
    return %c0_i32, %c0_i32_0 : i32, i32
  }
  func.func @transform_8(%arg0: i32) -> (i32, i32, i32) {
    %c0_i32 = arith.constant 0 : i32
    %c0_i32_0 = arith.constant 0 : i32
    %c0_i32_1 = arith.constant 0 : i32
    return %arg0, %c0_i32, %c0_i32_0 : i32, i32, i32
  }
  func.func @transform_9(%arg0: i32) -> (i32, i32, i32) {
    %c0_i32 = arith.constant 0 : i32
    %c0_i32_0 = arith.constant 0 : i32
    %c0_i32_1 = arith.constant 0 : i32
    return %arg0, %c0_i32, %c0_i32_0 : i32, i32, i32
  }
}

</mosaic_0001>

<llo_original>
// kernel: tpu_custom_call.1
$region0: #{tpu_custom_call.1}
  #allocation0 [shape = 'u32[]', space=smem, size = 0x4, offset = 0x4, fixed_abs, tag = 'smem constant byte address 0x4 - core index']
  #allocation1 [shape = 'u32[144,128]{1,0:T(1,128)}', space=vmem, size = 0x12000, scoped, tag = 'internal scratch']
  %s0 = inlined_call_operand.hbm [shape: f32[4,16,64], index: 0, kind: input, shape index: {}]
  %s1 = inlined_call_operand.vmem [shape: bf16[192,128], index: 1, kind: input, shape index: {}]
  %s2 = inlined_call_operand.vmem [shape: f32[1,128], index: 2, kind: input, shape index: {}]
  %s3 = inlined_call_operand.vmem [shape: f32[1,128], index: 3, kind: input, shape index: {}]
  %s4 = inlined_call_operand.hbm [shape: bf16[384,128], index: 4, kind: input, shape index: {}]
  %s5 = inlined_call_operand.vmem [shape: f32[1,128], index: 5, kind: input, shape index: {}]
  %s6 = inlined_call_operand.vmem [shape: f32[1,128], index: 6, kind: input, shape index: {}]
  %s7 = inlined_call_operand.vmem [shape: bf16[128,64], index: 7, kind: input, shape index: {}]
  %s8 = inlined_call_operand.hbm [shape: bf16[4,16,128], index: 8, kind: output, shape index: {0}]
  %s9 = inlined_call_operand.hbm [shape: bf16[4,8,64], index: 9, kind: output, shape index: {1}]
  %10 = xla_tuple %s8, %s9
  %s11 = sld [smem:[#allocation0]]
  $region81: #{tpu_custom_call.1} parent=0
    _
  %s13 = ssub.s32 1, %s11
  %s14 = scalar_select 0, %s13, %s11
  $region1: #{tpu_custom_call.1} parent=0
    #allocation2 [shape = 'u8[32768]{0}', space=vmem, size = 0x8000, scoped, tag = 'input window, operand 0']
    #allocation3 [shape = 's32[2]{0}', space=sflag, size = 0x8, scoped, tag = 'scoped memory for tpu_custom_call.1']
    #allocation4 [shape = 's32[2]{0}', space=sflag, size = 0x8, scoped, tag = 'scoped memory for tpu_custom_call.1']
    #allocation5 [shape = 'u8[98304]{0}', space=vmem, size = 0x18000, scoped, tag = 'input window, operand 4, single buffered']
    #allocation6 [shape = 's32[1]{0}', space=sflag, size = 0x4, scoped, tag = 'scoped memory for tpu_custom_call.1']
    #allocation7 [shape = 'u8[16384]{0}', space=vmem, size = 0x4000, scoped, tag = 'output window, operand 0']
    #allocation8 [shape = 'u8[8192]{0}', space=vmem, size = 0x2000, scoped, tag = 'output window, operand 1']
    #allocation9 [shape = 's32[2]{0}', space=sflag, size = 0x8, scoped, tag = 'scoped memory for tpu_custom_call.1']
    %15 = vsyncpa [#allocation3], 0
    %s16 = scalar_lea.sflag [#allocation3], 1
    %17 = vsyncpa %s16, 0
    %18 = vsyncpa [#allocation6], 0
    %19 = vsyncpa [#allocation4], 0
    %s20 = scalar_lea.sflag [#allocation4], 1
    %21 = vsyncpa %s20, 0
    %22 = vsyncpa [#allocation9], 0
    %s23 = scalar_lea.sflag [#allocation9], 1
    %24 = vsyncpa %s23, 0
    loop: start=0, step=1, limit=4
    $region2: #{tpu_custom_call.1} parent=1 // loop_pre_header
      _
    $region3: #{tpu_custom_call.1} parent=1 // loop_header
      %s26 = sphi 0, %s30
      %p27 = scmp.ge.s32.totalorder %s26, 4
      %s36 = sphi 0, %s38
      %s39 = sphi 0, %s36
      %s40 = sphi 0, %s39
      %s56 = sphi 0, %s40
      %s60 = sphi 0, %s60
      %s62 = sphi 0, %s60
      %s63 = sphi 0, %s62
      %s77 = sphi 0, %s63
      %s81 = sphi 0, %s81
      %s83 = sphi 0, %s81
      %s84 = sphi 0, %s83
      %s98 = sphi 0, %s84
      %s102 = sphi 0, %s102
      %s104 = sphi 0, %s102
      %s105 = sphi 0, %s104
      %s119 = sphi 0, %s105
      %s123 = sphi 0, %s123
      %s125 = sphi 0, %s123
      %s126 = sphi 0, %s125
      %s140 = sphi 0, %s126
      %s144 = sphi 0, %s144
      %s146 = sphi 0, %s144
      %s147 = sphi 0, %s146
      %s161 = sphi 0, %s147
      %s165 = sphi 0, %s165
      %s167 = sphi 0, %s165
      %s168 = sphi 0, %s167
      %s182 = sphi 0, %s168
      %s186 = sphi 0, %s186
      %s188 = sphi 0, %s186
      %s189 = sphi 0, %s188
      %s203 = sphi 0, %s189
      %s209 = sphi 0, %s211
      %s212 = sphi 0, %s209
      %s213 = sphi 0, %s212
      %s229 = sphi 0, %s213
      %s235 = sphi 0, %s237
      %s238 = sphi 0, %s235
      %s239 = sphi 0, %s238
      %s255 = sphi 0, %s239
    $region4: #{tpu_custom_call.1} parent=1 // loop_header_branch
      %29 = sbr.rel (%p27) target = $region8
    $region5: #{tpu_custom_call.1} parent=1 // loop_body
      %s31 = ssub.s32 %s26, 1
      %s32 = ssub.s32 %s26, 2
      %s33 = sadd.s32 %s26, 1
      %s34 = ssub.s32 %s26, %s33
      %p35 = scmp.eq.s32.totalorder %s34, 0
      %s37 = sadd.s32 %s36, 1
      %s38 = scalar_select %p35, %s36, %s37
      %p41 = pneg %p35
      %p42 = scmp.eq.s32.totalorder %s26, 1
      %p43 = por %p41, %p42
      %p44 = scmp.ne.s32.totalorder %s36, %s39
      %p45 = scmp.eq.s32.totalorder %s26, 0
      %p46 = por %p44, %p45
      %p47 = scmp.ne.s32.totalorder %s36, %s39
      %p48 = scmp.eq.s32.totalorder %s31, 1
      %p49 = por %p47, %p48
      %p50 = scmp.ne.s32.totalorder %s39, %s40
      %p51 = scmp.eq.s32.totalorder %s31, 0
      %p52 = por %p50, %p51
      %p53 = scmp.ne.s32.totalorder %s39, %s40
      %p54 = scmp.eq.s32.totalorder %s32, 1
      %p55 = por %p53, %p54
      %p57 = scmp.ne.s32.totalorder %s40, %s56
      %p58 = scmp.eq.s32.totalorder %s32, 0
      %p59 = por %p57, %p58
      %s61 = sadd.s32 %s60, 1
      %p64 = scmp.eq.s32.totalorder %s26, 1
      %p65 = scmp.ne.s32.totalorder %s60, %s62
      %p66 = scmp.eq.s32.totalorder %s26, 0
      %p67 = por %p65, %p66
      %p68 = scmp.ne.s32.totalorder %s60, %s62
      %p69 = scmp.eq.s32.totalorder %s31, 1
      %p70 = por %p68, %p69
      %p71 = scmp.ne.s32.totalorder %s62, %s63
      %p72 = scmp.eq.s32.totalorder %s31, 0
      %p73 = por %p71, %p72
      %p74 = scmp.ne.s32.totalorder %s62, %s63
      %p75 = scmp.eq.s32.totalorder %s32, 1
      %p76 = por %p74, %p75
      %p78 = scmp.ne.s32.totalorder %s63, %s77
      %p79 = scmp.eq.s32.totalorder %s32, 0
      %p80 = por %p78, %p79
      %s82 = sadd.s32 %s81, 1
      %p85 = scmp.eq.s32.totalorder %s26, 1
      %p86 = scmp.ne.s32.totalorder %s81, %s83
      %p87 = scmp.eq.s32.totalorder %s26, 0
      %p88 = por %p86, %p87
      %p89 = scmp.ne.s32.totalorder %s81, %s83
      %p90 = scmp.eq.s32.totalorder %s31, 1
      %p91 = por %p89, %p90
      %p92 = scmp.ne.s32.totalorder %s83, %s84
      %p93 = scmp.eq.s32.totalorder %s31, 0
      %p94 = por %p92, %p93
      %p95 = scmp.ne.s32.totalorder %s83, %s84
      %p96 = scmp.eq.s32.totalorder %s32, 1
      %p97 = por %p95, %p96
      %p99 = scmp.ne.s32.totalorder %s84, %s98
      %p100 = scmp.eq.s32.totalorder %s32, 0
      %p101 = por %p99, %p100
      %s103 = sadd.s32 %s102, 1
      %p106 = scmp.eq.s32.totalorder %s26, 1
      %p107 = scmp.ne.s32.totalorder %s102, %s104
      %p108 = scmp.eq.s32.totalorder %s26, 0
      %p109 = por %p107, %p108
      %p110 = scmp.ne.s32.totalorder %s102, %s104
      %p111 = scmp.eq.s32.totalorder %s31, 1
      %p112 = por %p110, %p111
      %p113 = scmp.ne.s32.totalorder %s104, %s105
      %p114 = scmp.eq.s32.totalorder %s31, 0
      %p115 = por %p113, %p114
      %p116 = scmp.ne.s32.totalorder %s104, %s105
      %p117 = scmp.eq.s32.totalorder %s32, 1
      %p118 = por %p116, %p117
      %p120 = scmp.ne.s32.totalorder %s105, %s119
      %p121 = scmp.eq.s32.totalorder %s32, 0
      %p122 = por %p120, %p121
      %s124 = sadd.s32 %s123, 1
      %p127 = scmp.eq.s32.totalorder %s26, 1
      %p128 = scmp.ne.s32.totalorder %s123, %s125
      %p129 = scmp.eq.s32.totalorder %s26, 0
      %p130 = por %p128, %p129
      %p131 = scmp.ne.s32.totalorder %s123, %s125
      %p132 = scmp.eq.s32.totalorder %s31, 1
      %p133 = por %p131, %p132
      %p134 = scmp.ne.s32.totalorder %s125, %s126
      %p135 = scmp.eq.s32.totalorder %s31, 0
      %p136 = por %p134, %p135
      %p137 = scmp.ne.s32.totalorder %s125, %s126
      %p138 = scmp.eq.s32.totalorder %s32, 1
      %p139 = por %p137, %p138
      %p141 = scmp.ne.s32.totalorder %s126, %s140
      %p142 = scmp.eq.s32.totalorder %s32, 0
      %p143 = por %p141, %p142
      %s145 = sadd.s32 %s144, 1
      %p148 = scmp.eq.s32.totalorder %s26, 1
      %p149 = scmp.ne.s32.totalorder %s144, %s146
      %p150 = scmp.eq.s32.totalorder %s26, 0
      %p151 = por %p149, %p150
      %p152 = scmp.ne.s32.totalorder %s144, %s146
      %p153 = scmp.eq.s32.totalorder %s31, 1
      %p154 = por %p152, %p153
      %p155 = scmp.ne.s32.totalorder %s146, %s147
      %p156 = scmp.eq.s32.totalorder %s31, 0
      %p157 = por %p155, %p156
      %p158 = scmp.ne.s32.totalorder %s146, %s147
      %p159 = scmp.eq.s32.totalorder %s32, 1
      %p160 = por %p158, %p159
      %p162 = scmp.ne.s32.totalorder %s147, %s161
      %p163 = scmp.eq.s32.totalorder %s32, 0
      %p164 = por %p162, %p163
      %s166 = sadd.s32 %s165, 1
      %p169 = scmp.eq.s32.totalorder %s26, 1
      %p170 = scmp.ne.s32.totalorder %s165, %s167
      %p171 = scmp.eq.s32.totalorder %s26, 0
      %p172 = por %p170, %p171
      %p173 = scmp.ne.s32.totalorder %s165, %s167
      %p174 = scmp.eq.s32.totalorder %s31, 1
      %p175 = por %p173, %p174
      %p176 = scmp.ne.s32.totalorder %s167, %s168
      %p177 = scmp.eq.s32.totalorder %s31, 0
      %p178 = por %p176, %p177
      %p179 = scmp.ne.s32.totalorder %s167, %s168
      %p180 = scmp.eq.s32.totalorder %s32, 1
      %p181 = por %p179, %p180
      %p183 = scmp.ne.s32.totalorder %s168, %s182
      %p184 = scmp.eq.s32.totalorder %s32, 0
      %p185 = por %p183, %p184
      %s187 = sadd.s32 %s186, 1
      %p190 = scmp.eq.s32.totalorder %s26, 1
      %p191 = scmp.ne.s32.totalorder %s186, %s188
      %p192 = scmp.eq.s32.totalorder %s26, 0
      %p193 = por %p191, %p192
      %p194 = scmp.ne.s32.totalorder %s186, %s188
      %p195 = scmp.eq.s32.totalorder %s31, 1
      %p196 = por %p194, %p195
      %p197 = scmp.ne.s32.totalorder %s188, %s189
      %p198 = scmp.eq.s32.totalorder %s31, 0
      %p199 = por %p197, %p198
      %p200 = scmp.ne.s32.totalorder %s188, %s189
      %p201 = scmp.eq.s32.totalorder %s32, 1
      %p202 = por %p200, %p201
      %p204 = scmp.ne.s32.totalorder %s189, %s203
      %p205 = scmp.eq.s32.totalorder %s32, 0
      %p206 = por %p204, %p205
      %s207 = ssub.s32 %s26, %s33
      %p208 = scmp.eq.s32.totalorder %s207, 0
      %s210 = sadd.s32 %s209, 1
      %s211 = scalar_select %p208, %s209, %s210
      %p214 = pneg %p208
      %p215 = scmp.eq.s32.totalorder %s26, 1
      %p216 = por %p214, %p215
      %p217 = scmp.ne.s32.totalorder %s209, %s212
      %p218 = scmp.eq.s32.totalorder %s26, 0
      %p219 = por %p217, %p218
      %p220 = scmp.ne.s32.totalorder %s209, %s212
      %p221 = scmp.eq.s32.totalorder %s31, 1
      %p222 = por %p220, %p221
      %p223 = scmp.ne.s32.totalorder %s212, %s213
      %p224 = scmp.eq.s32.totalorder %s31, 0
      %p225 = por %p223, %p224
      %p226 = scmp.ne.s32.totalorder %s212, %s213
      %p227 = scmp.eq.s32.totalorder %s32, 1
      %p228 = por %p226, %p227
      %p230 = scmp.ne.s32.totalorder %s213, %s229
      %p231 = scmp.eq.s32.totalorder %s32, 0
      %p232 = por %p230, %p231
      %s233 = ssub.s32 %s26, %s33
      %p234 = scmp.eq.s32.totalorder %s233, 0
      %s236 = sadd.s32 %s235, 1
      %s237 = scalar_select %p234, %s235, %s236
      %p240 = pneg %p234
      %p241 = scmp.eq.s32.totalorder %s26, 1
      %p242 = por %p240, %p241
      %p243 = scmp.ne.s32.totalorder %s235, %s238
      %p244 = scmp.eq.s32.totalorder %s26, 0
      %p245 = por %p243, %p244
      %p246 = scmp.ne.s32.totalorder %s235, %s238
      %p247 = scmp.eq.s32.totalorder %s31, 1
      %p248 = por %p246, %p247
      %p249 = scmp.ne.s32.totalorder %s238, %s239
      %p250 = scmp.eq.s32.totalorder %s31, 0
      %p251 = por %p249, %p250
      %p252 = scmp.ne.s32.totalorder %s238, %s239
      %p253 = scmp.eq.s32.totalorder %s32, 1
      %p254 = por %p252, %p253
      %p256 = scmp.ne.s32.totalorder %s239, %s255
      %p257 = scmp.eq.s32.totalorder %s32, 0
      %p258 = por %p256, %p257
      %p259 = scmp.le.s32.totalorder 1, %s26
      %p260 = scmp.lt.s32.totalorder %s26, 3
      %p261 = pnand %p259, %p260
      %p262 = pneg %p261
      // Predicated region
      $region9: #{tpu_custom_call.1} parent=5 // pred_check
        _
      $region10: #{tpu_custom_call.1} parent=5 // pred_check_branch
        %264 = sbr.rel (%p261) target = $region12
      $region11: #{tpu_custom_call.1} parent=5 // pred_region
        %s265 = ssub.s32 %s26, 1
        // Predicated region
        $region13: #{tpu_custom_call.1} parent=11 // pred_check
          %p266 = pneg %p73
        $region14: #{tpu_custom_call.1} parent=11 // pred_check_branch
          %268 = sbr.rel (%p266) target = $region16
        $region15: #{tpu_custom_call.1} parent=11 // pred_region
          _
        $region16: #{tpu_custom_call.1} parent=11 // pred_fallthru
          _
        // Predicated region
        $region17: #{tpu_custom_call.1} parent=11 // pred_check
          %p269 = pneg %p94
        $region18: #{tpu_custom_call.1} parent=11 // pred_check_branch
          %271 = sbr.rel (%p269) target = $region20
        $region19: #{tpu_custom_call.1} parent=11 // pred_region
          _
        $region20: #{tpu_custom_call.1} parent=11 // pred_fallthru
          _
        // Predicated region
        $region21: #{tpu_custom_call.1} parent=11 // pred_check
          %p272 = pneg %p115
        $region22: #{tpu_custom_call.1} parent=11 // pred_check_branch
          %274 = sbr.rel (%p272) target = $region24
        $region23: #{tpu_custom_call.1} parent=11 // pred_region
          _
        $region24: #{tpu_custom_call.1} parent=11 // pred_fallthru
          _
        // Predicated region
        $region25: #{tpu_custom_call.1} parent=11 // pred_check
          %p275 = pneg %p136
        $region26: #{tpu_custom_call.1} parent=11 // pred_check_branch
          %277 = sbr.rel (%p275) target = $region28
        $region27: #{tpu_custom_call.1} parent=11 // pred_region
          %s279 = ssub.s32 3072, 3072
          %280 = vsyncadd [#allocation6], %s279
          %s281 = sshll.u32 [#allocation5], 4
          %s282 = int_to_ptr.vmem [resolvable:$true] %s281
          %287 = dma.hbm_to_vmem [thread:$0]  %s4, 3072, %s282, [#allocation6], 64, 64, 4
        $region28: #{tpu_custom_call.1} parent=11 // pred_fallthru
          _
        // Predicated region
        $region29: #{tpu_custom_call.1} parent=11 // pred_check
          %p288 = pneg %p157
        $region30: #{tpu_custom_call.1} parent=11 // pred_check_branch
          %290 = sbr.rel (%p288) target = $region32
        $region31: #{tpu_custom_call.1} parent=11 // pred_region
          _
        $region32: #{tpu_custom_call.1} parent=11 // pred_fallthru
          _
        // Predicated region
        $region33: #{tpu_custom_call.1} parent=11 // pred_check
          %p291 = pneg %p178
        $region34: #{tpu_custom_call.1} parent=11 // pred_check_branch
          %293 = sbr.rel (%p291) target = $region36
        $region35: #{tpu_custom_call.1} parent=11 // pred_region
          _
        $region36: #{tpu_custom_call.1} parent=11 // pred_fallthru
          _
        // Predicated region
        $region37: #{tpu_custom_call.1} parent=11 // pred_check
          %p294 = pneg %p199
        $region38: #{tpu_custom_call.1} parent=11 // pred_check_branch
          %296 = sbr.rel (%p294) target = $region40
        $region39: #{tpu_custom_call.1} parent=11 // pred_region
          _
        $region40: #{tpu_custom_call.1} parent=11 // pred_fallthru
          _
      $region12: #{tpu_custom_call.1} parent=5 // pred_fallthru
        _
      %p297 = scmp.lt.s32.totalorder %s26, 2
      // Predicated region
      $region41: #{tpu_custom_call.1} parent=5 // pred_check
        %p298 = pneg %p297
      $region42: #{tpu_custom_call.1} parent=5 // pred_check_branch
        %300 = sbr.rel (%p298) target = $region44
      $region43: #{tpu_custom_call.1} parent=5 // pred_region
        // Predicated region
        $region45: #{tpu_custom_call.1} parent=43 // pred_check
          %p301 = pneg %p46
        $region46: #{tpu_custom_call.1} parent=43 // pred_check_branch
          %303 = sbr.rel (%p301) target = $region48
        $region47: #{tpu_custom_call.1} parent=43 // pred_region
          %s304 = sand.u32 %s36, 1
          %s305 = scalar_lea.sflag [#allocation3], %s304
          %s306 = sand.u32 %s36, 1
          %s307 = smul.addr %s306, 32
          %s308 = scalar_lea.vmem [#allocation2], %s307
          %s309 = smul.u32 2, %s26
          %s311 = ssub.s32 512, 512
          %312 = vsyncadd %s305, %s311
          %s313 = smul.addr %s309, 2
          %s314 = smul.addr %s313, 128
          %s315 = scalar_lea.hbm %s0, %s314
          %s316 = sshll.u32 %s308, 4
          %s317 = int_to_ptr.vmem [resolvable:$true] %s316
          %322 = dma.hbm_to_vmem [thread:$0]  %s315, 512, %s317, %s305, 128, 128, 8
        $region48: #{tpu_custom_call.1} parent=43 // pred_fallthru
          _
      $region44: #{tpu_custom_call.1} parent=5 // pred_fallthru
        _
      %p323 = scmp.le.s32.totalorder 1, %s26
      %p324 = scmp.lt.s32.totalorder %s26, 3
      %p325 = pnand %p323, %p324
      %p326 = pneg %p325
      // Predicated region
      $region49: #{tpu_custom_call.1} parent=5 // pred_check
        _
      $region50: #{tpu_custom_call.1} parent=5 // pred_check_branch
        %328 = sbr.rel (%p325) target = $region52
      $region51: #{tpu_custom_call.1} parent=5 // pred_region
        %s329 = ssub.s32 %s26, 1
        %s330 = sand.u32 %s39, 1
        %s331 = scalar_lea.sflag [#allocation3], %s330
        %s332 = sand.u32 %s39, 1
        %s333 = smul.addr %s332, 32
        %s334 = scalar_lea.vmem [#allocation2], %s333
        // Predicated region
        $region53: #{tpu_custom_call.1} parent=51 // pred_check
          %p335 = pneg %p52
        $region54: #{tpu_custom_call.1} parent=51 // pred_check_branch
          %337 = sbr.rel (%p335) target = $region56
        $region55: #{tpu_custom_call.1} parent=51 // pred_region
          %338 = dma.done %s331, 512
        $region56: #{tpu_custom_call.1} parent=51 // pred_fallthru
          _
        // Predicated region
        $region57: #{tpu_custom_call.1} parent=51 // pred_check
          %p339 = pneg %p136
        $region58: #{tpu_custom_call.1} parent=51 // pred_check_branch
          %341 = sbr.rel (%p339) target = $region60
        $region59: #{tpu_custom_call.1} parent=51 // pred_region
          %342 = dma.done [#allocation6], 3072
        $region60: #{tpu_custom_call.1} parent=51 // pred_fallthru
          _
        %s343 = sand.u32 %s39, 1
        %s344 = scalar_lea.sflag [#allocation3], %s343
        %s345 = sand.u32 %s39, 1
        %s346 = smul.addr %s345, 32
        %s347 = scalar_lea.vmem [#allocation2], %s346
        %p348 = pneg %p52
        %p349 = pneg %p49
        %p350 = pneg %p73
        %p351 = pneg %p70
        %p352 = pneg %p94
        %p353 = pneg %p91
        %p354 = pneg %p115
        %p355 = pneg %p112
        %p356 = pneg %p136
        %p357 = pneg %p133
        %p358 = pneg %p157
        %p359 = pneg %p154
        %p360 = pneg %p178
        %p361 = pneg %p175
        %p362 = pneg %p199
        %p363 = pneg %p196
        %p364 = pneg %p225
        %p365 = pneg %p222
        %s366 = sand.u32 %s212, 1
        %s367 = scalar_lea.sflag [#allocation4], %s366
        %s368 = sand.u32 %s212, 1
        %s369 = smul.addr %s368, 16
        %s370 = scalar_lea.vmem [#allocation7], %s369
        %p371 = pneg %p251
        %p372 = pneg %p248
        %s373 = sand.u32 %s238, 1
        %s374 = scalar_lea.sflag [#allocation9], %s373
        %s375 = sand.u32 %s238, 1
        %s376 = smul.addr %s375, 8
        %s377 = scalar_lea.vmem [#allocation8], %s376
        %s378 = smul.u32 2, %s31
        %s379 = smul.u32 2, %s31
        %s380 = smul.u32 2, %s31
        %v382 = vld [vmem:[%s334] sm:$0xff]
        %v383 = vld [vmem:[%s334 + $0x8] sm:$0xff]
        %v384 = vld [vmem:[%s334 + $0x10] sm:$0xff]
        %v385 = vld [vmem:[%s334 + $0x18] sm:$0xff]
        %v386 = vlaneseq
        %v387 = vshrl.u32 %v386, 7
        %v388 = vadd.s32 %v387, 8
        %v389 = vadd.s32 %v387, 16
        %v390 = vadd.s32 %v387, 24
        %vm391 = vcmp.lt.s32.totalorder %v387, 0
        %v392 = vsub.s32 0, %v387
        %v393 = vsel %vm391, %v392, %v387
        %v394 = vshrl.u32 %v393, 4
        %v395 = vand.u32 %v393, 15
        %v396 = vsub.s32 0, %v395
        %v397 = vsel %vm391, %v396, %v395
        %vm398 = vcmp.lt.s32.totalorder %v388, 0
        %v399 = vsub.s32 0, %v388
        %v400 = vsel %vm398, %v399, %v388
        %v401 = vshrl.u32 %v400, 4
        %v402 = vand.u32 %v400, 15
        %v403 = vsub.s32 0, %v402
        %v404 = vsel %vm398, %v403, %v402
        %vm405 = vcmp.lt.s32.totalorder %v389, 0
        %v406 = vsub.s32 0, %v389
        %v407 = vsel %vm405, %v406, %v389
        %v408 = vshrl.u32 %v407, 4
        %v409 = vand.u32 %v407, 15
        %v410 = vsub.s32 0, %v409
        %v411 = vsel %vm405, %v410, %v409
        %vm412 = vcmp.lt.s32.totalorder %v390, 0
        %v413 = vsub.s32 0, %v390
        %v414 = vsel %vm412, %v413, %v390
        %v415 = vshrl.u32 %v414, 4
        %v416 = vand.u32 %v414, 15
        %v417 = vsub.s32 0, %v416
        %v418 = vsel %vm412, %v417, %v416
        %vm419 = vcmp.ne.s32.totalorder %v397, 0
        %vm420 = vcmp.ne.s32.totalorder %v404, 0
        %vm421 = vcmp.ne.s32.totalorder %v411, 0
        %vm422 = vcmp.ne.s32.totalorder %v418, 0
        %vm423 = vcmp.lt.s32.totalorder %v397, 0
        %vm424 = vcmp.lt.s32.totalorder %v404, 0
        %vm425 = vcmp.lt.s32.totalorder %v411, 0
        %vm426 = vcmp.lt.s32.totalorder %v418, 0
        %vm427 = vmand %vm423, %vm419
        %vm428 = vmand %vm424, %vm420
        %vm429 = vmand %vm425, %vm421
        %vm430 = vmand %vm426, %vm422
        %v431 = vadd.s32 %v397, 16
        %v432 = vadd.s32 %v404, 16
        %v433 = vadd.s32 %v411, 16
        %v434 = vadd.s32 %v418, 16
        %v435 = vsel %vm427, %v431, %v397
        %v436 = vsel %vm428, %v432, %v404
        %v437 = vsel %vm429, %v433, %v411
        %v438 = vsel %vm430, %v434, %v418
        %vm439 = vcmp.eq.s32.totalorder %v435, 0
        %vm440 = vcmp.eq.s32.totalorder %v436, 0
        %vm441 = vcmp.eq.s32.totalorder %v437, 0
        %vm442 = vcmp.eq.s32.totalorder %v438, 0
        %v443 = vrot.slane %v382, 7
        %v444 = vrot.slane %v383, 7
        %v445 = vrot.slane %v384, 7
        %v446 = vrot.slane %v385, 7
        %vm447 = vcmp.lt.s32.totalorder %v387, 1
        %v448 = vsel %vm447, %v445, %v446
        %v449 = vsel %vm447, %v444, %v445
        %v450 = vsel %vm447, %v443, %v444
        %v451 = vsel %vm447, %v446, %v443
        %v452 = vsel %vm439, 0.0, %v451
        %v453 = vsel %vm440, 0.0, %v450
        %v454 = vsel %vm441, 0.0, %v449
        %v455 = vsel %vm442, 0.0, %v448
        %vm456 = vcmp.eq.s32.totalorder %v435, 15
        %vm457 = vcmp.eq.s32.totalorder %v436, 15
        %vm458 = vcmp.eq.s32.totalorder %v437, 15
        %vm459 = vcmp.eq.s32.totalorder %v438, 15
        %v460 = vrot.slane %v382, 1
        %v461 = vrot.slane %v383, 1
        %v462 = vrot.slane %v384, 1
        %v463 = vrot.slane %v385, 1
        %vm464 = vcmp.lt.s32.totalorder %v387, 7
        %v465 = vsel %vm464, %v462, %v463
        %v466 = vsel %vm464, %v461, %v462
        %v467 = vsel %vm464, %v460, %v461
        %v468 = vsel %vm464, %v463, %v460
        %v469 = vsel %vm456, 0.0, %v467
        %v470 = vsel %vm457, 0.0, %v466
        %v471 = vsel %vm458, 0.0, %v465
        %v472 = vsel %vm459, 0.0, %v468
        %477 = vrot.lane.b32.xlu0 %v382, 64
        %v478 = vpop.permute.xlu0 %477
        %479 = vrot.lane.b32.xlu0 %v383, 64
        %v480 = vpop.permute.xlu0 %479
        %481 = vrot.lane.b32.xlu0 %v384, 64
        %v482 = vpop.permute.xlu0 %481
        %483 = vrot.lane.b32.xlu0 %v385, 64
        %v484 = vpop.permute.xlu0 %483
        %vm489 = vcmask 523264
        %v490 = vsel %vm489, %v452, %v478
        %v491 = vsel %vm489, %v453, %v480
        %v492 = vsel %vm489, %v454, %v482
        %v493 = vsel %vm489, %v455, %v484
        %v494 = vpack.c.bf16 %v491, %v490
        %v495 = vpack.c.bf16 %v470, %v469
        %v496 = vpack.c.bf16 %v493, %v492
        %v497 = vpack.c.bf16 %v472, %v471
        %v498 = vld [vmem:[%s1] sm:$0xf]
        %v499 = vld [vmem:[%s1 + $0x4] sm:$0xf]
        %v500 = vld [vmem:[%s1 + $0x8] sm:$0xf]
        %v501 = vld [vmem:[%s1 + $0xc] sm:$0xf]
        %v502 = vld [vmem:[%s1 + $0x10] sm:$0xf]
        %v503 = vld [vmem:[%s1 + $0x14] sm:$0xf]
        %v504 = vld [vmem:[%s1 + $0x18] sm:$0xf]
        %v505 = vld [vmem:[%s1 + $0x1c] sm:$0xf]
        %v506 = vld [vmem:[%s1 + $0x20] sm:$0xf]
        %v507 = vld [vmem:[%s1 + $0x24] sm:$0xf]
        %v508 = vld [vmem:[%s1 + $0x28] sm:$0xf]
        %v509 = vld [vmem:[%s1 + $0x2c] sm:$0xf]
        %v510 = vld [vmem:[%s1 + $0x30] sm:$0xf]
        %v511 = vld [vmem:[%s1 + $0x34] sm:$0xf]
        %v512 = vld [vmem:[%s1 + $0x38] sm:$0xf]
        %v513 = vld [vmem:[%s1 + $0x3c] sm:$0xf]
        %v514 = vld [vmem:[%s1 + $0x40] sm:$0xf]
        %v515 = vld [vmem:[%s1 + $0x44] sm:$0xf]
        %v516 = vld [vmem:[%s1 + $0x48] sm:$0xf]
        %v517 = vld [vmem:[%s1 + $0x4c] sm:$0xf]
        %v518 = vld [vmem:[%s1 + $0x50] sm:$0xf]
        %v519 = vld [vmem:[%s1 + $0x54] sm:$0xf]
        %v520 = vld [vmem:[%s1 + $0x58] sm:$0xf]
        %v521 = vld [vmem:[%s1 + $0x5c] sm:$0xf]
        %v546 = vunpack.c.l.b16 %v498
        %v547 = vunpack.c.l.b16 %v499
        %v548 = vunpack.c.l.b16 %v500
        %v549 = vunpack.c.l.b16 %v501
        %v550 = vunpack.c.l.b16 %v502
        %v551 = vunpack.c.l.b16 %v503
        %v552 = vunpack.c.l.b16 %v504
        %v553 = vunpack.c.l.b16 %v505
        %v554 = vunpack.c.l.b16 %v506
        %v555 = vunpack.c.l.b16 %v507
        %v556 = vunpack.c.l.b16 %v508
        %v557 = vunpack.c.l.b16 %v509
        %v558 = vunpack.c.l.b16 %v510
        %v559 = vunpack.c.l.b16 %v511
        %v560 = vunpack.c.l.b16 %v512
        %v561 = vunpack.c.l.b16 %v513
        %v562 = vunpack.c.l.b16 %v514
        %v563 = vunpack.c.l.b16 %v515
        %v564 = vunpack.c.l.b16 %v516
        %v565 = vunpack.c.l.b16 %v517
        %v566 = vunpack.c.l.b16 %v518
        %v567 = vunpack.c.l.b16 %v519
        %v568 = vunpack.c.l.b16 %v520
        %v569 = vunpack.c.l.b16 %v521
        %v570 = vpack.c.b16 %v547, %v546
        %v571 = vpack.c.b16 %v549, %v548
        %v572 = vpack.c.b16 %v551, %v550
        %v573 = vpack.c.b16 %v553, %v552
        %v574 = vpack.c.b16 %v555, %v554
        %v575 = vpack.c.b16 %v557, %v556
        %v576 = vpack.c.b16 %v559, %v558
        %v577 = vpack.c.b16 %v561, %v560
        %v578 = vpack.c.b16 %v563, %v562
        %v579 = vpack.c.b16 %v565, %v564
        %v580 = vpack.c.b16 %v567, %v566
        %v581 = vpack.c.b16 %v569, %v568
        %v595 = vsel %vm489, %v495, 0
        %v598 = vsel %vm489, %v497, 0
        %600 = vmatprep.subr.bf16.mxu0 0
        %601 = vmatpush1.bf16.msra.mxu0 %v570
        %602 = vmatprep.subr.bf16.mxu0 0
        %603 = vmatpush1.bf16.msra.mxu0 %v571
        %604 = vmatprep.subr.bf16.mxu0 0
        %605 = vmatpush1.bf16.msra.mxu0 %v572
        %606 = vmatprep.subr.bf16.mxu0 0
        %607 = vmatpush1.bf16.msra.mxu0 %v573
        %608 = vmatprep.subr.bf16.mxu0 0
        %609 = vmatpush1.bf16.msra.mxu0 %v574
        %610 = vmatprep.subr.bf16.mxu0 0
        %611 = vmatpush1.bf16.msra.mxu0 %v575
        %612 = vmatprep.subr.bf16.mxu0 0
        %613 = vmatpush1.bf16.msra.mxu0 %v576
        %614 = vmatprep.subr.bf16.mxu0 0
        %615 = vmatpush1.bf16.msra.mxu0 %v577
        %616 = vmatprep.subr.bf16.mxu0 0
        %617 = vmatpush1.bf16.msra.mxu0 %v578
        %618 = vmatprep.subr.bf16.mxu0 0
        %619 = vmatpush1.bf16.msra.mxu0 %v579
        %620 = vmatprep.subr.bf16.mxu0 0
        %621 = vmatpush1.bf16.msra.mxu0 %v580
        %622 = vmatprep.subr.bf16.mxu0 0
        %623 = vmatpush1.bf16.msra.mxu0 %v581
        %624 = vmatprep.subr.bf16.mxu0 0
        %625 = vmatpush1.bf16.msra.mxu0 0
        %626 = vmatprep.subr.bf16.mxu0 0
        %627 = vmatpush1.bf16.msra.mxu0 0
        %628 = vmatprep.subr.bf16.mxu0 0
        %629 = vmatpush1.bf16.msra.mxu0 0
        %630 = vmatprep.subr.bf16.mxu0 0
        %631 = vmatpush1.bf16.msra.mxu0 0
        %632 = vmatprep.mubr.bf16.mxu0 %v595
        %633 = vmatmul.mubr.bf16.gmra.mrb[0].mxu0 %v494
        %v634 = vpop.f32.mrb[0].mxu0
        %v635 = vadd.f32 0.0, %v634
        %v636 = vpop.f32.mrb[0].mxu0
        %v637 = vpop.f32.mrb[0].mxu0
        %v638 = vadd.f32 0.0, %v637
        %v639 = vpop.f32.mrb[0].mxu0
        %640 = vmatprep.mubr.bf16.mxu0 %v598
        %641 = vmatmul.mubr.bf16.gmra.mrb[0].mxu0 %v496
        %v642 = vpop.f32.mrb[0].mxu0
        %v643 = vadd.f32 0.0, %v642
        %v644 = vpop.f32.mrb[0].mxu0
        %v645 = vpop.f32.mrb[0].mxu0
        %v646 = vadd.f32 0.0, %v645
        %v647 = vpop.f32.mrb[0].mxu0
        %648 = vdwg.mxu0
        %v649 = vld [vmem:[%s2] sm:$0x1]
        %v651 = vlaneseq
        %v652 = vshrl.u32 %v651, 7
        %v653 = vsub.s32 0, %v652
        %v654 = vrot.slane %v649, %v653
        %v656 = vmul.f32 %v635, %v654
        %v657 = vmul.f32 %v638, %v654
        %v658 = vmul.f32 %v643, %v654
        %v659 = vmul.f32 %v646, %v654
        %v660 = vld [vmem:[%s3] sm:$0x1]
        %v662 = vlaneseq
        %v663 = vshrl.u32 %v662, 7
        %v664 = vsub.s32 0, %v663
        %v665 = vrot.slane %v660, %v664
        %v667 = vadd.f32 %v656, %v665
        %v668 = vadd.f32 %v657, %v665
        %v669 = vadd.f32 %v658, %v665
        %v670 = vadd.f32 %v659, %v665
        %v671 = vmax.f32 %v667, 0.0
        %v672 = vmax.f32 %v668, 0.0
        %v673 = vmax.f32 %v669, 0.0
        %v674 = vmax.f32 %v670, 0.0
        %v675 = vrot.slane %v671, 7
        %v676 = vrot.slane %v672, 7
        %v677 = vrot.slane %v673, 7
        %v678 = vrot.slane %v674, 7
        %v679 = vsel %vm447, %v677, %v678
        %v680 = vsel %vm447, %v676, %v677
        %v681 = vsel %vm447, %v675, %v676
        %v682 = vsel %vm447, %v678, %v675
        %v683 = vsel %vm439, 0.0, %v682
        %v684 = vsel %vm440, 0.0, %v681
        %v685 = vsel %vm441, 0.0, %v680
        %v686 = vsel %vm442, 0.0, %v679
        %v687 = vrot.slane %v671, 1
        %v688 = vrot.slane %v672, 1
        %v689 = vrot.slane %v673, 1
        %v690 = vrot.slane %v674, 1
        %v691 = vsel %vm464, %v689, %v690
        %v692 = vsel %vm464, %v688, %v689
        %v693 = vsel %vm464, %v687, %v688
        %v694 = vsel %vm464, %v690, %v687
        %v695 = vsel %vm456, 0.0, %v693
        %v696 = vsel %vm457, 0.0, %v692
        %v697 = vsel %vm458, 0.0, %v691
        %v698 = vsel %vm459, 0.0, %v694
        %v699 = vpack.c.bf16 %v684, %v683
        %v700 = vpack.c.bf16 %v672, %v671
        %v701 = vpack.c.bf16 %v696, %v695
        %v702 = vpack.c.bf16 %v686, %v685
        %v703 = vpack.c.bf16 %v674, %v673
        %v704 = vpack.c.bf16 %v698, %v697
        %v705 = vld [vmem:[#allocation5] sm:$0xf]
        %v706 = vld [vmem:[#allocation5 + $0x4] sm:$0xf]
        %v707 = vld [vmem:[#allocation5 + $0x8] sm:$0xf]
        %v708 = vld [vmem:[#allocation5 + $0xc] sm:$0xf]
        %v709 = vld [vmem:[#allocation5 + $0x10] sm:$0xf]
        %v710 = vld [vmem:[#allocation5 + $0x14] sm:$0xf]
        %v711 = vld [vmem:[#allocation5 + $0x18] sm:$0xf]
        %v712 = vld [vmem:[#allocation5 + $0x1c] sm:$0xf]
        %v713 = vld [vmem:[#allocation5 + $0x20] sm:$0xf]
        %v714 = vld [vmem:[#allocation5 + $0x24] sm:$0xf]
        %v715 = vld [vmem:[#allocation5 + $0x28] sm:$0xf]
        %v716 = vld [vmem:[#allocation5 + $0x2c] sm:$0xf]
        %v717 = vld [vmem:[#allocation5 + $0x30] sm:$0xf]
        %v718 = vld [vmem:[#allocation5 + $0x34] sm:$0xf]
        %v719 = vld [vmem:[#allocation5 + $0x38] sm:$0xf]
        %v720 = vld [vmem:[#allocation5 + $0x3c] sm:$0xf]
        %v721 = vld [vmem:[#allocation5 + $0x40] sm:$0xf]
        %v722 = vld [vmem:[#allocation5 + $0x44] sm:$0xf]
        %v723 = vld [vmem:[#allocation5 + $0x48] sm:$0xf]
        %v724 = vld [vmem:[#allocation5 + $0x4c] sm:$0xf]
        %v725 = vld [vmem:[#allocation5 + $0x50] sm:$0xf]
        %v726 = vld [vmem:[#allocation5 + $0x54] sm:$0xf]
        %v727 = vld [vmem:[#allocation5 + $0x58] sm:$0xf]
        %v728 = vld [vmem:[#allocation5 + $0x5c] sm:$0xf]
        %v729 = vld [vmem:[#allocation5 + $0x60] sm:$0xf]
        %v730 = vld [vmem:[#allocation5 + $0x64] sm:$0xf]
        %v731 = vld [vmem:[#allocation5 + $0x68] sm:$0xf]
        %v732 = vld [vmem:[#allocation5 + $0x6c] sm:$0xf]
        %v733 = vld [vmem:[#allocation5 + $0x70] sm:$0xf]
        %v734 = vld [vmem:[#allocation5 + $0x74] sm:$0xf]
        %v735 = vld [vmem:[#allocation5 + $0x78] sm:$0xf]
        %v736 = vld [vmem:[#allocation5 + $0x7c] sm:$0xf]
        %v737 = vld [vmem:[#allocation5 + $0x80] sm:$0xf]
        %v738 = vld [vmem:[#allocation5 + $0x84] sm:$0xf]
        %v739 = vld [vmem:[#allocation5 + $0x88] sm:$0xf]
        %v740 = vld [vmem:[#allocation5 + $0x8c] sm:$0xf]
        %v741 = vld [vmem:[#allocation5 + $0x90] sm:$0xf]
        %v742 = vld [vmem:[#allocation5 + $0x94] sm:$0xf]
        %v743 = vld [vmem:[#allocation5 + $0x98] sm:$0xf]
        %v744 = vld [vmem:[#allocation5 + $0x9c] sm:$0xf]
        %v745 = vld [vmem:[#allocation5 + $0xa0] sm:$0xf]
        %v746 = vld [vmem:[#allocation5 + $0xa4] sm:$0xf]
        %v747 = vld [vmem:[#allocation5 + $0xa8] sm:$0xf]
        %v748 = vld [vmem:[#allocation5 + $0xac] sm:$0xf]
        %v749 = vld [vmem:[#allocation5 + $0xb0] sm:$0xf]
        %v750 = vld [vmem:[#allocation5 + $0xb4] sm:$0xf]
        %v751 = vld [vmem:[#allocation5 + $0xb8] sm:$0xf]
        %v752 = vld [vmem:[#allocation5 + $0xbc] sm:$0xf]
        %v801 = vunpack.c.l.b16 %v705
        %v802 = vunpack.c.l.b16 %v706
        %v803 = vunpack.c.l.b16 %v707
        %v804 = vunpack.c.l.b16 %v708
        %v805 = vunpack.c.l.b16 %v709
        %v806 = vunpack.c.l.b16 %v710
        %v807 = vunpack.c.l.b16 %v711
        %v808 = vunpack.c.l.b16 %v712
        %v809 = vunpack.c.l.b16 %v713
        %v810 = vunpack.c.l.b16 %v714
        %v811 = vunpack.c.l.b16 %v715
        %v812 = vunpack.c.l.b16 %v716
        %v813 = vunpack.c.l.b16 %v717
        %v814 = vunpack.c.l.b16 %v718
        %v815 = vunpack.c.l.b16 %v719
        %v816 = vunpack.c.l.b16 %v720
        %v817 = vunpack.c.l.b16 %v721
        %v818 = vunpack.c.l.b16 %v722
        %v819 = vunpack.c.l.b16 %v723
        %v820 = vunpack.c.l.b16 %v724
        %v821 = vunpack.c.l.b16 %v725
        %v822 = vunpack.c.l.b16 %v726
        %v823 = vunpack.c.l.b16 %v727
        %v824 = vunpack.c.l.b16 %v728
        %v825 = vunpack.c.l.b16 %v729
        %v826 = vunpack.c.l.b16 %v730
        %v827 = vunpack.c.l.b16 %v731
        %v828 = vunpack.c.l.b16 %v732
        %v829 = vunpack.c.l.b16 %v733
        %v830 = vunpack.c.l.b16 %v734
        %v831 = vunpack.c.l.b16 %v735
        %v832 = vunpack.c.l.b16 %v736
        %v833 = vunpack.c.l.b16 %v737
        %v834 = vunpack.c.l.b16 %v738
        %v835 = vunpack.c.l.b16 %v739
        %v836 = vunpack.c.l.b16 %v740
        %v837 = vunpack.c.l.b16 %v741
        %v838 = vunpack.c.l.b16 %v742
        %v839 = vunpack.c.l.b16 %v743
        %v840 = vunpack.c.l.b16 %v744
        %v841 = vunpack.c.l.b16 %v745
        %v842 = vunpack.c.l.b16 %v746
        %v843 = vunpack.c.l.b16 %v747
        %v844 = vunpack.c.l.b16 %v748
        %v845 = vunpack.c.l.b16 %v749
        %v846 = vunpack.c.l.b16 %v750
        %v847 = vunpack.c.l.b16 %v751
        %v848 = vunpack.c.l.b16 %v752
        %v849 = vpack.c.b16 %v802, %v801
        %v850 = vpack.c.b16 %v804, %v803
        %v851 = vpack.c.b16 %v806, %v805
        %v852 = vpack.c.b16 %v808, %v807
        %v853 = vpack.c.b16 %v810, %v809
        %v854 = vpack.c.b16 %v812, %v811
        %v855 = vpack.c.b16 %v814, %v813
        %v856 = vpack.c.b16 %v816, %v815
        %v857 = vpack.c.b16 %v818, %v817
        %v858 = vpack.c.b16 %v820, %v819
        %v859 = vpack.c.b16 %v822, %v821
        %v860 = vpack.c.b16 %v824, %v823
        %v861 = vpack.c.b16 %v826, %v825
        %v862 = vpack.c.b16 %v828, %v827
        %v863 = vpack.c.b16 %v830, %v829
        %v864 = vpack.c.b16 %v832, %v831
        %v865 = vpack.c.b16 %v834, %v833
        %v866 = vpack.c.b16 %v836, %v835
        %v867 = vpack.c.b16 %v838, %v837
        %v868 = vpack.c.b16 %v840, %v839
        %v869 = vpack.c.b16 %v842, %v841
        %v870 = vpack.c.b16 %v844, %v843
        %v871 = vpack.c.b16 %v846, %v845
        %v872 = vpack.c.b16 %v848, %v847
        %897 = vmatprep.subr.bf16.mxu0 0
        %898 = vmatpush1.bf16.msra.mxu0 %v849
        %899 = vmatprep.subr.bf16.mxu0 0
        %900 = vmatpush1.bf16.msra.mxu0 %v850
        %901 = vmatprep.subr.bf16.mxu0 0
        %902 = vmatpush1.bf16.msra.mxu0 %v851
        %903 = vmatprep.subr.bf16.mxu0 0
        %904 = vmatpush1.bf16.msra.mxu0 %v852
        %905 = vmatprep.subr.bf16.mxu0 0
        %906 = vmatpush1.bf16.msra.mxu0 %v853
        %907 = vmatprep.subr.bf16.mxu0 0
        %908 = vmatpush1.bf16.msra.mxu0 %v854
        %909 = vmatprep.subr.bf16.mxu0 0
        %910 = vmatpush1.bf16.msra.mxu0 %v855
        %911 = vmatprep.subr.bf16.mxu0 0
        %912 = vmatpush1.bf16.msra.mxu0 %v856
        %913 = vmatprep.subr.bf16.mxu0 0
        %914 = vmatpush1.bf16.msra.mxu0 %v857
        %915 = vmatprep.subr.bf16.mxu0 0
        %916 = vmatpush1.bf16.msra.mxu0 %v858
        %917 = vmatprep.subr.bf16.mxu0 0
        %918 = vmatpush1.bf16.msra.mxu0 %v859
        %919 = vmatprep.subr.bf16.mxu0 0
        %920 = vmatpush1.bf16.msra.mxu0 %v860
        %921 = vmatprep.subr.bf16.mxu0 0
        %922 = vmatpush1.bf16.msra.mxu0 %v861
        %923 = vmatprep.subr.bf16.mxu0 0
        %924 = vmatpush1.bf16.msra.mxu0 %v862
        %925 = vmatprep.subr.bf16.mxu0 0
        %926 = vmatpush1.bf16.msra.mxu0 %v863
        %927 = vmatprep.subr.bf16.mxu0 0
        %928 = vmatpush1.bf16.msra.mxu0 %v864
        %929 = vmatprep.mubr.bf16.mxu0 %v700
        %930 = vmatmul.mubr.bf16.gmra.mrb[0].mxu0 %v699
        %v931 = vpop.f32.mrb[0].mxu0
        %v932 = vadd.f32 0.0, %v931
        %v933 = vpop.f32.mrb[0].mxu0
        %v934 = vpop.f32.mrb[0].mxu0
        %v935 = vadd.f32 0.0, %v934
        %v936 = vpop.f32.mrb[0].mxu0
        %937 = vmatprep.mubr.bf16.mxu0 %v703
        %938 = vmatmul.mubr.bf16.gmra.mrb[0].mxu0 %v702
        %v939 = vpop.f32.mrb[0].mxu0
        %v940 = vadd.f32 0.0, %v939
        %v941 = vpop.f32.mrb[0].mxu0
        %v942 = vpop.f32.mrb[0].mxu0
        %v943 = vadd.f32 0.0, %v942
        %v944 = vpop.f32.mrb[0].mxu0
        %945 = vdwg.mxu0
        %946 = vmatprep.subr.bf16.mxu0 0
        %947 = vmatpush1.bf16.msra.mxu0 %v865
        %948 = vmatprep.subr.bf16.mxu0 0
        %949 = vmatpush1.bf16.msra.mxu0 %v866
        %950 = vmatprep.subr.bf16.mxu0 0
        %951 = vmatpush1.bf16.msra.mxu0 %v867
        %952 = vmatprep.subr.bf16.mxu0 0
        %953 = vmatpush1.bf16.msra.mxu0 %v868
        %954 = vmatprep.subr.bf16.mxu0 0
        %955 = vmatpush1.bf16.msra.mxu0 %v869
        %956 = vmatprep.subr.bf16.mxu0 0
        %957 = vmatpush1.bf16.msra.mxu0 %v870
        %958 = vmatprep.subr.bf16.mxu0 0
        %959 = vmatpush1.bf16.msra.mxu0 %v871
        %960 = vmatprep.subr.bf16.mxu0 0
        %961 = vmatpush1.bf16.msra.mxu0 %v872
        %962 = vmatprep.subr.bf16.mxu0 0
        %963 = vmatpush1.bf16.msra.mxu0 0
        %964 = vmatprep.subr.bf16.mxu0 0
        %965 = vmatpush1.bf16.msra.mxu0 0
        %966 = vmatprep.subr.bf16.mxu0 0
        %967 = vmatpush1.bf16.msra.mxu0 0
        %968 = vmatprep.subr.bf16.mxu0 0
        %969 = vmatpush1.bf16.msra.mxu0 0
        %970 = vmatprep.subr.bf16.mxu0 0
        %971 = vmatpush1.bf16.msra.mxu0 0
        %972 = vmatprep.subr.bf16.mxu0 0
        %973 = vmatpush1.bf16.msra.mxu0 0
        %974 = vmatprep.subr.bf16.mxu0 0
        %975 = vmatpush1.bf16.msra.mxu0 0
        %976 = vmatprep.subr.bf16.mxu0 0
        %977 = vmatpush1.bf16.msra.mxu0 0
        %978 = vmatprep.mubr.bf16.mxu0 0
        %979 = vmatmul.mubr.bf16.gmra.mrb[0].mxu0 %v701
        %v980 = vpop.f32.mrb[0].mxu0
        %v981 = vadd.f32 %v932, %v980
        %v982 = vpop.f32.mrb[0].mxu0
        %v983 = vpop.f32.mrb[0].mxu0
        %v984 = vadd.f32 %v935, %v983
        %v985 = vpop.f32.mrb[0].mxu0
        %986 = vmatprep.mubr.bf16.mxu0 0
        %987 = vmatmul.mubr.bf16.gmra.mrb[0].mxu0 %v704
        %v988 = vpop.f32.mrb[0].mxu0
        %v989 = vadd.f32 %v940, %v988
        %v990 = vpop.f32.mrb[0].mxu0
        %v991 = vpop.f32.mrb[0].mxu0
        %v992 = vadd.f32 %v943, %v991
        %v993 = vpop.f32.mrb[0].mxu0
        %994 = vdwg.mxu0
        %v995 = vld [vmem:[%s5] sm:$0x1]
        %v997 = vlaneseq
        %v998 = vshrl.u32 %v997, 7
        %v999 = vsub.s32 0, %v998
        %v1000 = vrot.slane %v995, %v999
        %v1002 = vmul.f32 %v981, %v1000
        %v1003 = vmul.f32 %v984, %v1000
        %v1004 = vmul.f32 %v989, %v1000
        %v1005 = vmul.f32 %v992, %v1000
        %v1006 = vld [vmem:[%s6] sm:$0x1]
        %v1008 = vlaneseq
        %v1009 = vshrl.u32 %v1008, 7
        %v1010 = vsub.s32 0, %v1009
        %v1011 = vrot.slane %v1006, %v1010
        %v1013 = vadd.f32 %v1002, %v1011
        %v1014 = vadd.f32 %v1003, %v1011
        %v1015 = vadd.f32 %v1004, %v1011
        %v1016 = vadd.f32 %v1005, %v1011
        %v1017 = vmax.f32 %v1013, 0.0
        %v1018 = vmax.f32 %v1014, 0.0
        %v1019 = vmax.f32 %v1015, 0.0
        %v1020 = vmax.f32 %v1016, 0.0
        %v1021 = vpack.c.bf16 %v1018, %v1017
        %v1022 = vpack.c.bf16 %v1020, %v1019
        %v1025 = vunpack.c.l.b16 %v1021
        %v1026 = vunpack.c.h.b16 %v1021
        %v1027 = vunpack.c.l.b16 %v1022
        %v1028 = vunpack.c.h.b16 %v1022
        %v1029 = vpack.c.b16 %v1025, %v1025
        %v1030 = vpack.c.b16 %v1026, %v1026
        %v1031 = vpack.c.b16 %v1027, %v1027
        %v1032 = vpack.c.b16 %v1028, %v1028
        %1037 = vst [vmem:[%s370] sm:$0xf] %v1029
        %1038 = vst [vmem:[%s370 + $0x4] sm:$0xf] %v1030
        %1039 = vst [vmem:[%s370 + $0x8] sm:$0xf] %v1031
        %1040 = vst [vmem:[%s370 + $0xc] sm:$0xf] %v1032
        %v1045 = vcombine.high %v1017, %v1017
        %v1047 = vunpack.c.l.s4 1983009808
        %v1048 = vunpack.c.0.s8 %v1047
        %v1049 = vlaneseq
        %v1050 = vshrl.u32 %v1049, 7
        %v1051 = vsub.s32 %v1048, %v1050
        %v1052 = vrot.slane %v1017, %v1051
        %v1054 = vunpack.c.l.s4 1983009808
        %v1055 = vunpack.c.0.s8 %v1054
        %v1056 = vlaneseq
        %v1057 = vshrl.u32 %v1056, 7
        %v1058 = vsub.s32 %v1055, %v1057
        %v1059 = vrot.slane %v1045, %v1058
        %v1060 = vcombine.high %v1052, %v1052
        %v1061 = vcombine.high %v1059, %v1059
        %v1062 = vcombine.high %v1018, %v1018
        %v1064 = vunpack.c.l.s4 1983009808
        %v1065 = vunpack.c.0.s8 %v1064
        %v1066 = vlaneseq
        %v1067 = vshrl.u32 %v1066, 7
        %v1068 = vsub.s32 %v1065, %v1067
        %v1069 = vrot.slane %v1018, %v1068
        %v1071 = vunpack.c.l.s4 1983009808
        %v1072 = vunpack.c.0.s8 %v1071
        %v1073 = vlaneseq
        %v1074 = vshrl.u32 %v1073, 7
        %v1075 = vsub.s32 %v1072, %v1074
        %v1076 = vrot.slane %v1062, %v1075
        %v1077 = vcombine.high %v1069, %v1069
        %v1078 = vcombine.high %v1076, %v1076
        %v1079 = vcombine.high %v1019, %v1019
        %v1081 = vunpack.c.l.s4 1983009808
        %v1082 = vunpack.c.0.s8 %v1081
        %v1083 = vlaneseq
        %v1084 = vshrl.u32 %v1083, 7
        %v1085 = vsub.s32 %v1082, %v1084
        %v1086 = vrot.slane %v1019, %v1085
        %v1088 = vunpack.c.l.s4 1983009808
        %v1089 = vunpack.c.0.s8 %v1088
        %v1090 = vlaneseq
        %v1091 = vshrl.u32 %v1090, 7
        %v1092 = vsub.s32 %v1089, %v1091
        %v1093 = vrot.slane %v1079, %v1092
        %v1094 = vcombine.high %v1086, %v1086
        %v1095 = vcombine.high %v1093, %v1093
        %v1096 = vcombine.high %v1020, %v1020
        %v1098 = vunpack.c.l.s4 1983009808
        %v1099 = vunpack.c.0.s8 %v1098
        %v1100 = vlaneseq
        %v1101 = vshrl.u32 %v1100, 7
        %v1102 = vsub.s32 %v1099, %v1101
        %v1103 = vrot.slane %v1020, %v1102
        %v1105 = vunpack.c.l.s4 1983009808
        %v1106 = vunpack.c.0.s8 %v1105
        %v1107 = vlaneseq
        %v1108 = vshrl.u32 %v1107, 7
        %v1109 = vsub.s32 %v1106, %v1108
        %v1110 = vrot.slane %v1096, %v1109
        %v1111 = vcombine.high %v1103, %v1103
        %v1112 = vcombine.high %v1110, %v1110
        %vm1129 = vcmask 1041408
        %v1130 = vsel %vm1129, %v1052, -inf
        %v1131 = vrot.slane %v1130, 4
        %v1132 = vmax.f32 %v1130, %v1131
        %v1133 = vrot.slane %v1132, 2
        %v1134 = vmax.f32 %v1132, %v1133
        %v1135 = vrot.slane %v1134, 1
        %v1136 = vmax.f32 %v1134, %v1135
        %v1137 = vsel %vm1129, %v1060, -inf
        %v1138 = vrot.slane %v1137, 4
        %v1139 = vmax.f32 %v1137, %v1138
        %v1140 = vrot.slane %v1139, 2
        %v1141 = vmax.f32 %v1139, %v1140
        %v1142 = vrot.slane %v1141, 1
        %v1143 = vmax.f32 %v1141, %v1142
        %v1144 = vsel %vm1129, %v1059, -inf
        %v1145 = vrot.slane %v1144, 4
        %v1146 = vmax.f32 %v1144, %v1145
        %v1147 = vrot.slane %v1146, 2
        %v1148 = vmax.f32 %v1146, %v1147
        %v1149 = vrot.slane %v1148, 1
        %v1150 = vmax.f32 %v1148, %v1149
        %v1151 = vsel %vm1129, %v1061, -inf
        %v1152 = vrot.slane %v1151, 4
        %v1153 = vmax.f32 %v1151, %v1152
        %v1154 = vrot.slane %v1153, 2
        %v1155 = vmax.f32 %v1153, %v1154
        %v1156 = vrot.slane %v1155, 1
        %v1157 = vmax.f32 %v1155, %v1156
        %v1158 = vsel %vm1129, %v1069, -inf
        %v1159 = vrot.slane %v1158, 4
        %v1160 = vmax.f32 %v1158, %v1159
        %v1161 = vrot.slane %v1160, 2
        %v1162 = vmax.f32 %v1160, %v1161
        %v1163 = vrot.slane %v1162, 1
        %v1164 = vmax.f32 %v1162, %v1163
        %v1165 = vsel %vm1129, %v1077, -inf
        %v1166 = vrot.slane %v1165, 4
        %v1167 = vmax.f32 %v1165, %v1166
        %v1168 = vrot.slane %v1167, 2
        %v1169 = vmax.f32 %v1167, %v1168
        %v1170 = vrot.slane %v1169, 1
        %v1171 = vmax.f32 %v1169, %v1170
        %v1172 = vsel %vm1129, %v1076, -inf
        %v1173 = vrot.slane %v1172, 4
        %v1174 = vmax.f32 %v1172, %v1173
        %v1175 = vrot.slane %v1174, 2
        %v1176 = vmax.f32 %v1174, %v1175
        %v1177 = vrot.slane %v1176, 1
        %v1178 = vmax.f32 %v1176, %v1177
        %v1179 = vsel %vm1129, %v1078, -inf
        %v1180 = vrot.slane %v1179, 4
        %v1181 = vmax.f32 %v1179, %v1180
        %v1182 = vrot.slane %v1181, 2
        %v1183 = vmax.f32 %v1181, %v1182
        %v1184 = vrot.slane %v1183, 1
        %v1185 = vmax.f32 %v1183, %v1184
        %v1186 = vsel %vm1129, %v1086, -inf
        %v1187 = vrot.slane %v1186, 4
        %v1188 = vmax.f32 %v1186, %v1187
        %v1189 = vrot.slane %v1188, 2
        %v1190 = vmax.f32 %v1188, %v1189
        %v1191 = vrot.slane %v1190, 1
        %v1192 = vmax.f32 %v1190, %v1191
        %v1193 = vsel %vm1129, %v1094, -inf
        %v1194 = vrot.slane %v1193, 4
        %v1195 = vmax.f32 %v1193, %v1194
        %v1196 = vrot.slane %v1195, 2
        %v1197 = vmax.f32 %v1195, %v1196
        %v1198 = vrot.slane %v1197, 1
        %v1199 = vmax.f32 %v1197, %v1198
        %v1200 = vsel %vm1129, %v1093, -inf
        %v1201 = vrot.slane %v1200, 4
        %v1202 = vmax.f32 %v1200, %v1201
        %v1203 = vrot.slane %v1202, 2
        %v1204 = vmax.f32 %v1202, %v1203
        %v1205 = vrot.slane %v1204, 1
        %v1206 = vmax.f32 %v1204, %v1205
        %v1207 = vsel %vm1129, %v1095, -inf
        %v1208 = vrot.slane %v1207, 4
        %v1209 = vmax.f32 %v1207, %v1208
        %v1210 = vrot.slane %v1209, 2
        %v1211 = vmax.f32 %v1209, %v1210
        %v1212 = vrot.slane %v1211, 1
        %v1213 = vmax.f32 %v1211, %v1212
        %v1214 = vsel %vm1129, %v1103, -inf
        %v1215 = vrot.slane %v1214, 4
        %v1216 = vmax.f32 %v1214, %v1215
        %v1217 = vrot.slane %v1216, 2
        %v1218 = vmax.f32 %v1216, %v1217
        %v1219 = vrot.slane %v1218, 1
        %v1220 = vmax.f32 %v1218, %v1219
        %v1221 = vsel %vm1129, %v1111, -inf
        %v1222 = vrot.slane %v1221, 4
        %v1223 = vmax.f32 %v1221, %v1222
        %v1224 = vrot.slane %v1223, 2
        %v1225 = vmax.f32 %v1223, %v1224
        %v1226 = vrot.slane %v1225, 1
        %v1227 = vmax.f32 %v1225, %v1226
        %v1228 = vsel %vm1129, %v1110, -inf
        %v1229 = vrot.slane %v1228, 4
        %v1230 = vmax.f32 %v1228, %v1229
        %v1231 = vrot.slane %v1230, 2
        %v1232 = vmax.f32 %v1230, %v1231
        %v1233 = vrot.slane %v1232, 1
        %v1234 = vmax.f32 %v1232, %v1233
        %v1235 = vsel %vm1129, %v1112, -inf
        %v1236 = vrot.slane %v1235, 4
        %v1237 = vmax.f32 %v1235, %v1236
        %v1238 = vrot.slane %v1237, 2
        %v1239 = vmax.f32 %v1237, %v1238
        %v1240 = vrot.slane %v1239, 1
        %v1241 = vmax.f32 %v1239, %v1240
        %vm1258 = vcmask 1041409
        %v1259 = vsel %vm1258, %v1143, %v1136
        %vm1260 = vcmask 1042434
        %v1261 = vsel %vm1260, %v1150, %v1259
        %vm1262 = vcmask 1043459
        %v1263 = vsel %vm1262, %v1157, %v1261
        %vm1264 = vcmask 1044484
        %v1265 = vsel %vm1264, %v1164, %v1263
        %vm1266 = vcmask 1045509
        %v1267 = vsel %vm1266, %v1171, %v1265
        %vm1268 = vcmask 1046534
        %v1269 = vsel %vm1268, %v1178, %v1267
        %vm1270 = vcmask 1047559
        %v1271 = vsel %vm1270, %v1185, %v1269
        %v1272 = vsel %vm1258, %v1199, %v1192
        %v1273 = vsel %vm1260, %v1206, %v1272
        %v1274 = vsel %vm1262, %v1213, %v1273
        %v1275 = vsel %vm1264, %v1220, %v1274
        %v1276 = vsel %vm1266, %v1227, %v1275
        %v1277 = vsel %vm1268, %v1234, %v1276
        %v1278 = vsel %vm1270, %v1241, %v1277
        %1281 = vrot.lane.b32.xlu0 %v1271, 120
        %v1282 = vpop.permute.xlu0 %1281
        %1283 = vrot.lane.b32.xlu0 %v1278, 120
        %v1284 = vpop.permute.xlu0 %1283
        %v1287 = vrot.slane %v1282, 1
        %v1288 = vrot.slane %v1282, 2
        %v1289 = vrot.slane %v1282, 3
        %v1290 = vrot.slane %v1282, 4
        %v1291 = vrot.slane %v1282, 5
        %v1292 = vrot.slane %v1282, 6
        %v1293 = vrot.slane %v1282, 7
        %v1294 = vrot.slane %v1284, 1
        %v1295 = vrot.slane %v1284, 2
        %v1296 = vrot.slane %v1284, 3
        %v1297 = vrot.slane %v1284, 4
        %v1298 = vrot.slane %v1284, 5
        %v1299 = vrot.slane %v1284, 6
        %v1300 = vrot.slane %v1284, 7
        %v1317 = vmax.f32 %v1136, %v1282
        %v1318 = vmax.f32 %v1143, %v1287
        %v1319 = vmax.f32 %v1150, %v1288
        %v1320 = vmax.f32 %v1157, %v1289
        %v1321 = vmax.f32 %v1164, %v1290
        %v1322 = vmax.f32 %v1171, %v1291
        %v1323 = vmax.f32 %v1178, %v1292
        %v1324 = vmax.f32 %v1185, %v1293
        %v1325 = vmax.f32 %v1192, %v1284
        %v1326 = vmax.f32 %v1199, %v1294
        %v1327 = vmax.f32 %v1206, %v1295
        %v1328 = vmax.f32 %v1213, %v1296
        %v1329 = vmax.f32 %v1220, %v1297
        %v1330 = vmax.f32 %v1227, %v1298
        %v1331 = vmax.f32 %v1234, %v1299
        %v1332 = vmax.f32 %v1241, %v1300
        %v1333 = vpack.c.bf16 %v1317, %v1317
        %v1334 = vpack.c.bf16 %v1318, %v1318
        %v1335 = vpack.c.bf16 %v1319, %v1319
        %v1336 = vpack.c.bf16 %v1320, %v1320
        %v1337 = vpack.c.bf16 %v1321, %v1321
        %v1338 = vpack.c.bf16 %v1322, %v1322
        %v1339 = vpack.c.bf16 %v1323, %v1323
        %v1340 = vpack.c.bf16 %v1324, %v1324
        %v1341 = vpack.c.bf16 %v1325, %v1325
        %v1342 = vpack.c.bf16 %v1326, %v1326
        %v1343 = vpack.c.bf16 %v1327, %v1327
        %v1344 = vpack.c.bf16 %v1328, %v1328
        %v1345 = vpack.c.bf16 %v1329, %v1329
        %v1346 = vpack.c.bf16 %v1330, %v1330
        %v1347 = vpack.c.bf16 %v1331, %v1331
        %v1348 = vpack.c.bf16 %v1332, %v1332
        %v1349 = vld [vmem:[%s7] sm:$0xf]
        %v1350 = vld [vmem:[%s7 + $0x4] sm:$0xf]
        %v1351 = vld [vmem:[%s7 + $0x8] sm:$0xf]
        %v1352 = vld [vmem:[%s7 + $0xc] sm:$0xf]
        %v1353 = vld [vmem:[%s7 + $0x10] sm:$0xf]
        %v1354 = vld [vmem:[%s7 + $0x14] sm:$0xf]
        %v1355 = vld [vmem:[%s7 + $0x18] sm:$0xf]
        %v1356 = vld [vmem:[%s7 + $0x1c] sm:$0xf]
        %v1357 = vld [vmem:[%s7 + $0x20] sm:$0xf]
        %v1358 = vld [vmem:[%s7 + $0x24] sm:$0xf]
        %v1359 = vld [vmem:[%s7 + $0x28] sm:$0xf]
        %v1360 = vld [vmem:[%s7 + $0x2c] sm:$0xf]
        %v1361 = vld [vmem:[%s7 + $0x30] sm:$0xf]
        %v1362 = vld [vmem:[%s7 + $0x34] sm:$0xf]
        %v1363 = vld [vmem:[%s7 + $0x38] sm:$0xf]
        %v1364 = vld [vmem:[%s7 + $0x3c] sm:$0xf]
        %v1381 = vunpack.c.l.b16 %v1333
        %v1382 = vunpack.c.l.b16 %v1334
        %v1383 = vunpack.c.l.b16 %v1335
        %v1384 = vunpack.c.l.b16 %v1336
        %v1385 = vunpack.c.l.b16 %v1337
        %v1386 = vunpack.c.l.b16 %v1338
        %v1387 = vunpack.c.l.b16 %v1339
        %v1388 = vunpack.c.l.b16 %v1340
        %v1389 = vunpack.c.l.b16 %v1341
        %v1390 = vunpack.c.l.b16 %v1342
        %v1391 = vunpack.c.l.b16 %v1343
        %v1392 = vunpack.c.l.b16 %v1344
        %v1393 = vunpack.c.l.b16 %v1345
        %v1394 = vunpack.c.l.b16 %v1346
        %v1395 = vunpack.c.l.b16 %v1347
        %v1396 = vunpack.c.l.b16 %v1348
        %v1397 = vrot.slane %v1382, 7
        %v1398 = vsel %vm1258, %v1397, %v1381
        %v1399 = vrot.slane %v1383, 6
        %v1400 = vsel %vm1260, %v1399, %v1398
        %v1401 = vrot.slane %v1384, 5
        %v1402 = vsel %vm1262, %v1401, %v1400
        %v1403 = vrot.slane %v1385, 4
        %v1404 = vsel %vm1264, %v1403, %v1402
        %v1405 = vrot.slane %v1386, 3
        %v1406 = vsel %vm1266, %v1405, %v1404
        %v1407 = vrot.slane %v1387, 2
        %v1408 = vsel %vm1268, %v1407, %v1406
        %v1409 = vrot.slane %v1388, 1
        %v1410 = vsel %vm1270, %v1409, %v1408
        %v1411 = vrot.slane %v1390, 7
        %v1412 = vsel %vm1258, %v1411, %v1389
        %v1413 = vrot.slane %v1391, 6
        %v1414 = vsel %vm1260, %v1413, %v1412
        %v1415 = vrot.slane %v1392, 5
        %v1416 = vsel %vm1262, %v1415, %v1414
        %v1417 = vrot.slane %v1393, 4
        %v1418 = vsel %vm1264, %v1417, %v1416
        %v1419 = vrot.slane %v1394, 3
        %v1420 = vsel %vm1266, %v1419, %v1418
        %v1421 = vrot.slane %v1395, 2
        %v1422 = vsel %vm1268, %v1421, %v1420
        %v1423 = vrot.slane %v1396, 1
        %v1424 = vsel %vm1270, %v1423, %v1422
        %v1425 = vpack.c.b16 %v1424, %v1410
        %v1443 = vunpack.c.l.b16 %v1349
        %v1444 = vunpack.c.l.b16 %v1350
        %v1445 = vunpack.c.l.b16 %v1351
        %v1446 = vunpack.c.l.b16 %v1352
        %v1447 = vunpack.c.l.b16 %v1353
        %v1448 = vunpack.c.l.b16 %v1354
        %v1449 = vunpack.c.l.b16 %v1355
        %v1450 = vunpack.c.l.b16 %v1356
        %v1451 = vunpack.c.l.b16 %v1357
        %v1452 = vunpack.c.l.b16 %v1358
        %v1453 = vunpack.c.l.b16 %v1359
        %v1454 = vunpack.c.l.b16 %v1360
        %v1455 = vunpack.c.l.b16 %v1361
        %v1456 = vunpack.c.l.b16 %v1362
        %v1457 = vunpack.c.l.b16 %v1363
        %v1458 = vunpack.c.l.b16 %v1364
        %v1459 = vpack.c.b16 %v1444, %v1443
        %v1460 = vpack.c.b16 %v1446, %v1445
        %v1461 = vpack.c.b16 %v1448, %v1447
        %v1462 = vpack.c.b16 %v1450, %v1449
        %v1463 = vpack.c.b16 %v1452, %v1451
        %v1464 = vpack.c.b16 %v1454, %v1453
        %v1465 = vpack.c.b16 %v1456, %v1455
        %v1466 = vpack.c.b16 %v1458, %v1457
        %1475 = vmatprep.subr.bf16.mxu0 0
        %1476 = vmatpush1.bf16.msra.mxu0 %v1459
        %1477 = vmatprep.subr.bf16.mxu0 0
        %1478 = vmatpush1.bf16.msra.mxu0 %v1460
        %1479 = vmatprep.subr.bf16.mxu0 0
        %1480 = vmatpush1.bf16.msra.mxu0 %v1461
        %1481 = vmatprep.subr.bf16.mxu0 0
        %1482 = vmatpush1.bf16.msra.mxu0 %v1462
        %1483 = vmatprep.subr.bf16.mxu0 0
        %1484 = vmatpush1.bf16.msra.mxu0 %v1463
        %1485 = vmatprep.subr.bf16.mxu0 0
        %1486 = vmatpush1.bf16.msra.mxu0 %v1464
        %1487 = vmatprep.subr.bf16.mxu0 0
        %1488 = vmatpush1.bf16.msra.mxu0 %v1465
        %1489 = vmatprep.subr.bf16.mxu0 0
        %1490 = vmatpush1.bf16.msra.mxu0 %v1466
        %1491 = vmatprep.subr.bf16.mxu0 0
        %1492 = vmatpush1.bf16.msra.mxu0 0
        %1493 = vmatprep.subr.bf16.mxu0 0
        %1494 = vmatpush1.bf16.msra.mxu0 0
        %1495 = vmatprep.subr.bf16.mxu0 0
        %1496 = vmatpush1.bf16.msra.mxu0 0
        %1497 = vmatprep.subr.bf16.mxu0 0
        %1498 = vmatpush1.bf16.msra.mxu0 0
        %1499 = vmatprep.subr.bf16.mxu0 0
        %1500 = vmatpush1.bf16.msra.mxu0 0
        %1501 = vmatprep.subr.bf16.mxu0 0
        %1502 = vmatpush1.bf16.msra.mxu0 0
        %1503 = vmatprep.subr.bf16.mxu0 0
        %1504 = vmatpush1.bf16.msra.mxu0 0
        %1505 = vmatprep.subr.bf16.mxu0 0
        %1506 = vmatpush1.bf16.msra.mxu0 0
        %1507 = vmatprep.mubr.bf16.mxu0 0
        %1508 = vmatmul.mubr.bf16.gmra.mrb[0].mxu0 %v1425
        %v1509 = vpop.f32.mrb[0].mxu0
        %v1510 = vadd.f32 0.0, %v1509
        %v1511 = vpop.f32.mrb[0].mxu0
        %v1512 = vpop.f32.mrb[0].mxu0
        %v1513 = vadd.f32 0.0, %v1512
        %v1514 = vpop.f32.mrb[0].mxu0
        %1515 = vdwg.mxu0
        %v1516 = vpack.c.bf16 %v1510, %v1510
        %v1517 = vpack.c.bf16 %v1513, %v1513
        %vm1518 = vcmask 519168
        %1519 = vst.msk [vmem:[%s377] sm:$0xf] %vm1518, %v1516
        %1520 = vst.msk [vmem:[%s377 + $0x4] sm:$0xf] %vm1518, %v1517
        %s1521 = sand.u32 %s212, 1
        %s1522 = scalar_lea.sflag [#allocation4], %s1521
        %s1523 = sand.u32 %s212, 1
        %s1524 = smul.addr %s1523, 16
        %s1525 = scalar_lea.vmem [#allocation7], %s1524
        %s1526 = sand.u32 %s238, 1
        %s1527 = scalar_lea.sflag [#allocation9], %s1526
        %s1528 = sand.u32 %s238, 1
        %s1529 = smul.addr %s1528, 8
        %s1530 = scalar_lea.vmem [#allocation8], %s1529
        // Predicated region
        $region61: #{tpu_custom_call.1} parent=51 // pred_check
          %p1531 = pneg %p222
        $region62: #{tpu_custom_call.1} parent=51 // pred_check_branch
          %1533 = sbr.rel (%p1531) target = $region64
        $region63: #{tpu_custom_call.1} parent=51 // pred_region
          %s1534 = smul.u32 2, %s31
          %s1536 = ssub.s32 256, 256
          %1537 = vsyncadd %s1522, %s1536
          %s1538 = smul.addr %s1534, 2
          %s1539 = smul.addr %s1538, 64
          %s1540 = scalar_lea.hbm %s8, %s1539
          %s1541 = sshll.u32 %s1525, 4
          %s1542 = int_to_ptr.vmem [resolvable:$true] %s1541
          %1547 = dma.vmem_to_hbm [thread:$0]  %s1542, 256, %s1540, %s1522, 64, 64, 4
        $region64: #{tpu_custom_call.1} parent=51 // pred_fallthru
          _
        // Predicated region
        $region65: #{tpu_custom_call.1} parent=51 // pred_check
          %p1548 = pneg %p248
        $region66: #{tpu_custom_call.1} parent=51 // pred_check_branch
          %1550 = sbr.rel (%p1548) target = $region68
        $region67: #{tpu_custom_call.1} parent=51 // pred_region
          %s1551 = smul.u32 2, %s31
          %s1553 = ssub.s32 128, 128
          %1554 = vsyncadd %s1527, %s1553
          %s1555 = smul.addr %s1551, 64
          %s1556 = scalar_lea.hbm %s9, %s1555
          %s1557 = sshll.u32 %s1530, 4
          %s1558 = int_to_ptr.vmem [resolvable:$true] %s1557
          %1563 = dma.vmem_to_hbm [thread:$0]  %s1558, 128, %s1556, %s1527, 64, 64, 4
        $region68: #{tpu_custom_call.1} parent=51 // pred_fallthru
          _
      $region52: #{tpu_custom_call.1} parent=5 // pred_fallthru
        _
      %p1564 = scmp.le.s32.totalorder 2, %s26
      // Predicated region
      $region69: #{tpu_custom_call.1} parent=5 // pred_check
        %p1565 = pneg %p1564
      $region70: #{tpu_custom_call.1} parent=5 // pred_check_branch
        %1567 = sbr.rel (%p1565) target = $region72
      $region71: #{tpu_custom_call.1} parent=5 // pred_region
        %s1568 = ssub.s32 %s26, 2
        // Predicated region
        $region73: #{tpu_custom_call.1} parent=71 // pred_check
          %p1569 = pneg %p228
        $region74: #{tpu_custom_call.1} parent=71 // pred_check_branch
          %1571 = sbr.rel (%p1569) target = $region76
        $region75: #{tpu_custom_call.1} parent=71 // pred_region
          %s1572 = sand.u32 %s213, 1
          %s1573 = scalar_lea.sflag [#allocation4], %s1572
          %s1574 = sand.u32 %s213, 1
          %s1575 = smul.addr %s1574, 16
          %s1576 = scalar_lea.vmem [#allocation7], %s1575
          %1577 = dma.done %s1573, 256
        $region76: #{tpu_custom_call.1} parent=71 // pred_fallthru
          _
        // Predicated region
        $region77: #{tpu_custom_call.1} parent=71 // pred_check
          %p1578 = pneg %p254
        $region78: #{tpu_custom_call.1} parent=71 // pred_check_branch
          %1580 = sbr.rel (%p1578) target = $region80
        $region79: #{tpu_custom_call.1} parent=71 // pred_region
          %s1581 = sand.u32 %s239, 1
          %s1582 = scalar_lea.sflag [#allocation9], %s1581
          %s1583 = sand.u32 %s239, 1
          %s1584 = smul.addr %s1583, 8
          %s1585 = scalar_lea.vmem [#allocation8], %s1584
          %1586 = dma.done %s1582, 128
        $region80: #{tpu_custom_call.1} parent=71 // pred_fallthru
          _
      $region72: #{tpu_custom_call.1} parent=5 // pred_fallthru
        _
    $region6: #{tpu_custom_call.1} parent=1 // loop_footer
      %s30 = sadd.s32 1, %s26
    $region7: #{tpu_custom_call.1} parent=1 // loop_footer_branch
      %25 = sbr.rel target = $region3
    $region8: #{tpu_custom_call.1} parent=1 // loop_exit
      _
    %1587 = vsyncpa [#allocation3], 1
    %s1588 = scalar_lea.sflag [#allocation3], 1
    %1589 = vsyncpa %s1588, 1
    %1590 = vsyncpa [#allocation6], 1
    %1591 = vsyncpa [#allocation4], 1
    %s1592 = scalar_lea.sflag [#allocation4], 1
    %1593 = vsyncpa %s1592, 1
    %1594 = vsyncpa [#allocation9], 1
    %s1595 = scalar_lea.sflag [#allocation9], 1
    %1596 = vsyncpa %s1595, 1

</llo_original>
